<compile_context>
chip_gen: v6e
topology: v6e:2x2x1
jax: 0.10.0
libtpu: 0.0.40
codegen_flags: <defaults>
</compile_context>

<pallas_src>
import functools

import jax
import jax.numpy as jnp
from jax.experimental import pallas as pl
from jax.experimental.pallas import tpu as pltpu

KSIZE = 3   # conv kernel size (padding = 1 -> 'same')
POOL = 2    # max-pool window / stride


def conv_block_kernel(x_ref, w_ref, shift_ref, mask_ref, sel_ref,
                      conv_ref, pool_ref, patch_ref, *, band_rows, width):
    """One (image, row-band) per grid step.  All spatial data row-flattened.

    x_ref:     (Cin, (TH+2)*W + 2)  bf16 halo'd band: [0, top halo row, TH band
                                    rows, bottom halo row, 0], pitch == W
    w_ref:     (Cout, 9*Cin)        bf16 conv taps with BN scale folded in
    shift_ref: (Cout, 1)            f32 folded BN shift = beta - mean*scale
    mask_ref:  (2, TH*W)            bf16 edge masks (row0: col!=0, row1: col!=W-1)
    sel_ref:   (W, 2*Wh)            f32 one-hot even/odd column selector
    conv_ref:  (Cout, TH*W)         conv + BN + ReLU (NCHW-flat band)
    pool_ref:  (Cout, (TH//2)*Wh)   2x2 / stride-2 max pool (NCHW-flat band)
    patch_ref: (9*Cin, TH*W)        bf16 scratch for the fused patch matrix
    """
    TH, W = band_rows, width
    Cin = x_ref.shape[0]
    L = TH * W
    Wh = W // POOL

    mask_l = mask_ref[0:1, :]          # (1, L): zero where output col == 0
    mask_r = mask_ref[1:2, :]          # (1, L): zero where output col == W-1

    # 3x3 'same' conv: the 9 taps are 9 static lane-offset windows of the
    # halo'd flat band.  Stack them along K in a VMEM scratch so the conv is a
    # single K = 9*Cin bf16 MXU matmul instead of 9 depth-starved ones.
    for dy in range(KSIZE):
        for dx in range(KSIZE):
            start = dy * W + dx
            piece = x_ref[:, start:start + L]             # (Cin, L) bf16
            if dx == 0:
                piece = piece * mask_l                    # left zero padding
            elif dx == KSIZE - 1:
                piece = piece * mask_r                    # right zero padding
            k0 = (dy * KSIZE + dx) * Cin
            patch_ref[k0:k0 + Cin, :] = piece

    acc = jnp.dot(w_ref[...], patch_ref[...],
                  preferred_element_type=jnp.float32)     # (Cout, L) f32

    # BN scale already folded into the weights: add shift, ReLU, store
    # lane-dense (one unmasked full-block store).
    y = jnp.maximum(acc + shift_ref[...], 0.0)
    conv_ref[...] = y.astype(conv_ref.dtype)

    # 2x2 / stride-2 max pool from the in-register conv value: vertical max of
    # the two rows of each window (static slices), then one tiny reused
    # (W, 2*Wh) one-hot selector matmul splits even/odd columns -> max.
    for r in range(TH // POOL):
        top = y[:, (2 * r) * W:(2 * r) * W + W]           # (Cout, W)
        bot = y[:, (2 * r + 1) * W:(2 * r + 1) * W + W]
        rm = jnp.maximum(top, bot)
        eo = jnp.dot(rm, sel_ref[...],
                     preferred_element_type=jnp.float32)  # (Cout, 2*Wh)
        pool_ref[:, r * Wh:(r + 1) * Wh] = (
            jnp.maximum(eo[:, :Wh], eo[:, Wh:]).astype(pool_ref.dtype))


def conv_block_forward(x_nchw, w_oihw, gamma, beta, run_mean, run_var,
                       eps=1e-5, band_rows=None, out_dtype=jnp.float32,
                       vmem_limit_bytes=64 * 1024 * 1024):
    """ConvBlock.forward: returns (conv_out, pooled), both NCHW like PyTorch."""
    N, Cin, H, W = x_nchw.shape
    Cout, Cin_w, KH, KW = w_oihw.shape
    assert (KH, KW) == (KSIZE, KSIZE) and Cin_w == Cin
    assert H % POOL == 0 and W % POOL == 0, "pooling assumes even H and W"

    # Per-generation knob: ~16-32 on v7x (64 MiB VMEM), 32-64 on v5e/v6e.
    if band_rows is None:
        band_rows = H if H <= 32 else 32
    TH = band_rows
    assert TH % POOL == 0 and H % TH == 0
    B = H // TH
    if B > 1:
        # Keep per-band output blocks lane-dense (multiples of 128 lanes).
        assert (TH * W) % 128 == 0 and ((TH // POOL) * (W // POOL)) % 128 == 0

    Hh, Wh = H // POOL, W // POOL
    L = TH * W
    Lp = (TH + 2) * W

    # --- inputs --------------------------------------------------------------
    # bf16 cast (MXU), 1-row halo pad, then per-band halo'd flat slabs with one
    # extra zero lane on each end (so all 9 taps are plain in-bounds slices).
    xb16 = x_nchw.astype(jnp.bfloat16)
    xp = jnp.pad(xb16, ((0, 0), (0, 0), (1, 1), (0, 0)))            # row halo
    bands = jnp.stack(
        [xp[:, :, b * TH:b * TH + TH + 2, :] for b in range(B)], axis=1)
    x_bands = jnp.pad(bands.reshape(N, B, Cin, Lp),
                      ((0, 0), (0, 0), (0, 0), (1, 1)))             # (N,B,Cin,Lp+2)

    # Fold the inference-BN scale into the conv weights; keep only the shift.
    inv_std = 1.0 / jnp.sqrt(run_var + eps)
    scale = gamma * inv_std
    w_folded = w_oihw * scale[:, None, None, None]
    w_k = jnp.transpose(w_folded, (0, 2, 3, 1)).reshape(
        Cout, KSIZE * KSIZE * Cin).astype(jnp.bfloat16)
    shift = (beta - run_mean * scale).reshape(Cout, 1).astype(jnp.float32)

    # Constant helpers (built once in the wrapper; constant index_map keeps
    # them VMEM-resident across the whole grid -- nothing rebuilt per step).
    col = jnp.arange(L, dtype=jnp.int32) % W
    masks = jnp.stack([(col != 0), (col != W - 1)]).astype(jnp.bfloat16)
    cc = jnp.arange(2 * Wh, dtype=jnp.int32)
    src = jnp.where(cc < Wh, 2 * cc, 2 * (cc - Wh) + 1)
    sel = (jnp.arange(W, dtype=jnp.int32)[:, None]
           == src[None, :]).astype(jnp.float32)                     # (W, 2*Wh)

    kernel = functools.partial(conv_block_kernel, band_rows=TH, width=W)

    conv_flat, pool_flat = pl.pallas_call(
        kernel,
        out_shape=(
            jax.ShapeDtypeStruct((N, Cout, H * W), out_dtype),
            jax.ShapeDtypeStruct((N, Cout, Hh * Wh), out_dtype),
        ),
        grid_spec=pltpu.PrefetchScalarGridSpec(
            num_scalar_prefetch=0,
            grid=(N, B),
            in_specs=[
                pl.BlockSpec((None, None, Cin, Lp + 2), lambda n, b: (n, b, 0, 0)),
                pl.BlockSpec((Cout, KSIZE * KSIZE * Cin), lambda n, b: (0, 0)),
                pl.BlockSpec((Cout, 1), lambda n, b: (0, 0)),
                pl.BlockSpec((2, L), lambda n, b: (0, 0)),
                pl.BlockSpec((W, 2 * Wh), lambda n, b: (0, 0)),
            ],
            out_specs=[
                pl.BlockSpec((None, Cout, L), lambda n, b: (n, 0, b)),
                pl.BlockSpec((None, Cout, (TH // POOL) * Wh),
                             lambda n, b: (n, 0, b)),
            ],
            scratch_shapes=[pltpu.VMEM((KSIZE * KSIZE * Cin, L), jnp.bfloat16)],
        ),
        compiler_params=pltpu.CompilerParams(
            dimension_semantics=("parallel", "parallel"),
            vmem_limit_bytes=vmem_limit_bytes),
    )(x_bands, w_k, shift, masks, sel)

    # Free reshapes back to PyTorch NCHW (no transpose passes).
    conv_out = conv_flat.reshape(N, Cout, H, W)
    pooled = pool_flat.reshape(N, Cout, Hh, Wh)
    return conv_out, pooled


def reference(x_nchw, w_oihw, gamma, beta, run_mean, run_var, eps=1e-5):
    """Pure-JAX reference using the same bf16-rounded folded operands."""
    inv_std = 1.0 / jnp.sqrt(run_var + eps)
    scale = gamma * inv_std
    w_folded = (w_oihw * scale[:, None, None, None]
                ).astype(jnp.bfloat16).astype(jnp.float32)
    xb = x_nchw.astype(jnp.bfloat16).astype(jnp.float32)
    y = jax.lax.conv_general_dilated(
        xb, w_folded, window_strides=(1, 1), padding="SAME",
        dimension_numbers=("NCHW", "OIHW", "NCHW"),
        precision=jax.lax.Precision.HIGHEST)
    shift = (beta - run_mean * scale).reshape(1, -1, 1, 1)
    y = jnp.maximum(y + shift, 0.0)
    pooled = jax.lax.reduce_window(y, -jnp.inf, jax.lax.max,
                                   (1, 1, POOL, POOL), (1, 1, POOL, POOL),
                                   "VALID")
    return y, pooled


if __name__ == "__main__":
    # Small shapes consistent with the module: in_width=4, width=8, ksize=3.
    # H=W=32 with band_rows=16 exercises the 2-band halo'd tiling path.
    N, Cin, H, W, Cout = 2, 4, 32, 32, 8

    key = jax.random.PRNGKey(0)
    kx, kw, kg, kb = jax.random.split(key, 4)
    x = jax.random.normal(kx, (N, Cin, H, W), jnp.float32)
    w = 0.1 * jax.random.normal(kw, (Cout, Cin, KSIZE, KSIZE), jnp.float32)
    gamma = 1.0 + 0.1 * jax.random.normal(kg, (Cout,), jnp.float32)
    beta = 0.1 * jax.random.normal(kb, (Cout,), jnp.float32)
    run_mean = jnp.zeros((Cout,), jnp.float32)
    run_var = jnp.ones((Cout,), jnp.float32)

    conv_out, pooled = conv_block_forward(x, w, gamma, beta, run_mean, run_var,
                                          band_rows=16)
    conv_out = jax.block_until_ready(conv_out)
    pooled = jax.block_until_ready(pooled)

    ref_conv, ref_pool = reference(x, w, gamma, beta, run_mean, run_var)
    assert conv_out.shape == (N, Cout, H, W)
    assert pooled.shape == (N, Cout, H // POOL, W // POOL)
    # bf16 conv operands -> compare at a tolerance consistent with bf16 inputs.
    assert jnp.allclose(conv_out, ref_conv, atol=1e-2, rtol=1e-2)
    assert jnp.allclose(pooled, ref_pool, atol=1e-2, rtol=1e-2)

    print("KERNEL_OK")
</pallas_src>

<mosaic_0001>
module attributes {stable_mosaic.version = 11 : i64} {
  func.func @conv_block_kernel(%arg0: i32, %arg1: i32, %arg2: memref<1x1x4x578xbf16, #tpu.memory_space<vmem>>, %arg3: memref<8x36xbf16, #tpu.memory_space<vmem>>, %arg4: memref<8x1xf32, #tpu.memory_space<vmem>>, %arg5: memref<2x512xbf16, #tpu.memory_space<vmem>>, %arg6: memref<32x32xf32, #tpu.memory_space<vmem>>, %arg7: memref<1x8x512xf32, #tpu.memory_space<vmem>>, %arg8: memref<1x8x128xf32, #tpu.memory_space<vmem>>, %arg9: memref<36x512xbf16, #tpu.memory_space<vmem>>) attributes {dimension_semantics = [#tpu.dimension_semantics<parallel>, #tpu.dimension_semantics<parallel>], iteration_bounds = array<i64: 2, 2>, scalar_prefetch = 0 : i64, scratch_operands = 1 : i64, tpu.core_type = #tpu.core_type<tc>, window_params = [{transform_indices = @transform_0, window_bounds = array<i64: 1, 1, 4, 578>}, {pipeline_mode = #tpu.pipeline_mode<synchronous>, transform_indices = @transform_1, window_bounds = array<i64: 8, 36>}, {pipeline_mode = #tpu.pipeline_mode<synchronous>, transform_indices = @transform_2, window_bounds = array<i64: 8, 1>}, {pipeline_mode = #tpu.pipeline_mode<synchronous>, transform_indices = @transform_3, window_bounds = array<i64: 2, 512>}, {pipeline_mode = #tpu.pipeline_mode<synchronous>, transform_indices = @transform_4, window_bounds = array<i64: 32, 32>}, {transform_indices = @transform_5, window_bounds = array<i64: 1, 8, 512>}, {transform_indices = @transform_6, window_bounds = array<i64: 1, 8, 128>}]} {
    %c0 = arith.constant 0 : index
    %c0_0 = arith.constant 0 : index
    %0 = vector.load %arg5[%c0, %c0_0] : memref<2x512xbf16, #tpu.memory_space<vmem>>, vector<1x512xbf16>
    %c1 = arith.constant 1 : index
    %c0_1 = arith.constant 0 : index
    %1 = vector.load %arg5[%c1, %c0_1] : memref<2x512xbf16, #tpu.memory_space<vmem>>, vector<1x512xbf16>
    %c0_2 = arith.constant 0 : index
    %c0_3 = arith.constant 0 : index
    %c0_4 = arith.constant 0 : index
    %c0_5 = arith.constant 0 : index
    %2 = vector.load %arg2[%c0_2, %c0_3, %c0_4, %c0_5] : memref<1x1x4x578xbf16, #tpu.memory_space<vmem>>, vector<1x1x4x512xbf16>
    %3 = vector.shape_cast %2 : vector<1x1x4x512xbf16> to vector<4x512xbf16>
    %4 = vector.broadcast %0 : vector<1x512xbf16> to vector<4x512xbf16>
    %5 = arith.mulf %3, %4 : vector<4x512xbf16>
    %c0_6 = arith.constant 0 : index
    %c0_7 = arith.constant 0 : index
    %6 = vector.load %arg9[%c0_6, %c0_7] : memref<36x512xbf16, #tpu.memory_space<vmem>>, vector<4x512xbf16>
    tpu.vector_store %arg9[%c0_6, %c0_7], %5 {strides = array<i32>} : memref<36x512xbf16, #tpu.memory_space<vmem>>, vector<4x512xbf16>,
    %c0_8 = arith.constant 0 : index
    %c0_9 = arith.constant 0 : index
    %c0_10 = arith.constant 0 : index
    %c1_11 = arith.constant 1 : index
    %7 = vector.load %arg2[%c0_8, %c0_9, %c0_10, %c1_11] : memref<1x1x4x578xbf16, #tpu.memory_space<vmem>>, vector<1x1x4x512xbf16>
    %8 = vector.shape_cast %7 : vector<1x1x4x512xbf16> to vector<4x512xbf16>
    %c4 = arith.constant 4 : index
    %c0_12 = arith.constant 0 : index
    %9 = vector.load %arg9[%c4, %c0_12] : memref<36x512xbf16, #tpu.memory_space<vmem>>, vector<4x512xbf16>
    tpu.vector_store %arg9[%c4, %c0_12], %8 {strides = array<i32>} : memref<36x512xbf16, #tpu.memory_space<vmem>>, vector<4x512xbf16>,
    %c0_13 = arith.constant 0 : index
    %c0_14 = arith.constant 0 : index
    %c0_15 = arith.constant 0 : index
    %c2 = arith.constant 2 : index
    %10 = vector.load %arg2[%c0_13, %c0_14, %c0_15, %c2] : memref<1x1x4x578xbf16, #tpu.memory_space<vmem>>, vector<1x1x4x512xbf16>
    %11 = vector.shape_cast %10 : vector<1x1x4x512xbf16> to vector<4x512xbf16>
    %12 = vector.broadcast %1 : vector<1x512xbf16> to vector<4x512xbf16>
    %13 = arith.mulf %11, %12 : vector<4x512xbf16>
    %c8 = arith.constant 8 : index
    %c0_16 = arith.constant 0 : index
    %14 = vector.load %arg9[%c8, %c0_16] : memref<36x512xbf16, #tpu.memory_space<vmem>>, vector<4x512xbf16>
    tpu.vector_store %arg9[%c8, %c0_16], %13 {strides = array<i32>} : memref<36x512xbf16, #tpu.memory_space<vmem>>, vector<4x512xbf16>,
    %c0_17 = arith.constant 0 : index
    %c0_18 = arith.constant 0 : index
    %c0_19 = arith.constant 0 : index
    %c32 = arith.constant 32 : index
    %15 = vector.load %arg2[%c0_17, %c0_18, %c0_19, %c32] : memref<1x1x4x578xbf16, #tpu.memory_space<vmem>>, vector<1x1x4x512xbf16>
    %16 = vector.shape_cast %15 : vector<1x1x4x512xbf16> to vector<4x512xbf16>
    %17 = vector.broadcast %0 : vector<1x512xbf16> to vector<4x512xbf16>
    %18 = arith.mulf %16, %17 : vector<4x512xbf16>
    %c12 = arith.constant 12 : index
    %c0_20 = arith.constant 0 : index
    %19 = vector.load %arg9[%c12, %c0_20] : memref<36x512xbf16, #tpu.memory_space<vmem>>, vector<4x512xbf16>
    tpu.vector_store %arg9[%c12, %c0_20], %18 {strides = array<i32>} : memref<36x512xbf16, #tpu.memory_space<vmem>>, vector<4x512xbf16>,
    %c0_21 = arith.constant 0 : index
    %c0_22 = arith.constant 0 : index
    %c0_23 = arith.constant 0 : index
    %c33 = arith.constant 33 : index
    %20 = vector.load %arg2[%c0_21, %c0_22, %c0_23, %c33] : memref<1x1x4x578xbf16, #tpu.memory_space<vmem>>, vector<1x1x4x512xbf16>
    %21 = vector.shape_cast %20 : vector<1x1x4x512xbf16> to vector<4x512xbf16>
    %c16 = arith.constant 16 : index
    %c0_24 = arith.constant 0 : index
    %22 = vector.load %arg9[%c16, %c0_24] : memref<36x512xbf16, #tpu.memory_space<vmem>>, vector<4x512xbf16>
    tpu.vector_store %arg9[%c16, %c0_24], %21 {strides = array<i32>} : memref<36x512xbf16, #tpu.memory_space<vmem>>, vector<4x512xbf16>,
    %c0_25 = arith.constant 0 : index
    %c0_26 = arith.constant 0 : index
    %c0_27 = arith.constant 0 : index
    %c34 = arith.constant 34 : index
    %23 = vector.load %arg2[%c0_25, %c0_26, %c0_27, %c34] : memref<1x1x4x578xbf16, #tpu.memory_space<vmem>>, vector<1x1x4x512xbf16>
    %24 = vector.shape_cast %23 : vector<1x1x4x512xbf16> to vector<4x512xbf16>
    %25 = vector.broadcast %1 : vector<1x512xbf16> to vector<4x512xbf16>
    %26 = arith.mulf %24, %25 : vector<4x512xbf16>
    %c20 = arith.constant 20 : index
    %c0_28 = arith.constant 0 : index
    %27 = vector.load %arg9[%c20, %c0_28] : memref<36x512xbf16, #tpu.memory_space<vmem>>, vector<4x512xbf16>
    tpu.vector_store %arg9[%c20, %c0_28], %26 {strides = array<i32>} : memref<36x512xbf16, #tpu.memory_space<vmem>>, vector<4x512xbf16>,
    %c0_29 = arith.constant 0 : index
    %c0_30 = arith.constant 0 : index
    %c0_31 = arith.constant 0 : index
    %c64 = arith.constant 64 : index
    %28 = vector.load %arg2[%c0_29, %c0_30, %c0_31, %c64] : memref<1x1x4x578xbf16, #tpu.memory_space<vmem>>, vector<1x1x4x512xbf16>
    %29 = vector.shape_cast %28 : vector<1x1x4x512xbf16> to vector<4x512xbf16>
    %30 = vector.broadcast %0 : vector<1x512xbf16> to vector<4x512xbf16>
    %31 = arith.mulf %29, %30 : vector<4x512xbf16>
    %c24 = arith.constant 24 : index
    %c0_32 = arith.constant 0 : index
    %32 = vector.load %arg9[%c24, %c0_32] : memref<36x512xbf16, #tpu.memory_space<vmem>>, vector<4x512xbf16>
    tpu.vector_store %arg9[%c24, %c0_32], %31 {strides = array<i32>} : memref<36x512xbf16, #tpu.memory_space<vmem>>, vector<4x512xbf16>,
    %c0_33 = arith.constant 0 : index
    %c0_34 = arith.constant 0 : index
    %c0_35 = arith.constant 0 : index
    %c65 = arith.constant 65 : index
    %33 = vector.load %arg2[%c0_33, %c0_34, %c0_35, %c65] : memref<1x1x4x578xbf16, #tpu.memory_space<vmem>>, vector<1x1x4x512xbf16>
    %34 = vector.shape_cast %33 : vector<1x1x4x512xbf16> to vector<4x512xbf16>
    %c28 = arith.constant 28 : index
    %c0_36 = arith.constant 0 : index
    %35 = vector.load %arg9[%c28, %c0_36] : memref<36x512xbf16, #tpu.memory_space<vmem>>, vector<4x512xbf16>
    tpu.vector_store %arg9[%c28, %c0_36], %34 {strides = array<i32>} : memref<36x512xbf16, #tpu.memory_space<vmem>>, vector<4x512xbf16>,
    %c0_37 = arith.constant 0 : index
    %c0_38 = arith.constant 0 : index
    %c0_39 = arith.constant 0 : index
    %c66 = arith.constant 66 : index
    %36 = vector.load %arg2[%c0_37, %c0_38, %c0_39, %c66] : memref<1x1x4x578xbf16, #tpu.memory_space<vmem>>, vector<1x1x4x512xbf16>
    %37 = vector.shape_cast %36 : vector<1x1x4x512xbf16> to vector<4x512xbf16>
    %38 = vector.broadcast %1 : vector<1x512xbf16> to vector<4x512xbf16>
    %39 = arith.mulf %37, %38 : vector<4x512xbf16>
    %c32_40 = arith.constant 32 : index
    %c0_41 = arith.constant 0 : index
    %40 = vector.load %arg9[%c32_40, %c0_41] : memref<36x512xbf16, #tpu.memory_space<vmem>>, vector<4x512xbf16>
    tpu.vector_store %arg9[%c32_40, %c0_41], %39 {strides = array<i32>} : memref<36x512xbf16, #tpu.memory_space<vmem>>, vector<4x512xbf16>,
    %c0_42 = arith.constant 0 : index
    %c0_43 = arith.constant 0 : index
    %41 = vector.load %arg3[%c0_42, %c0_43] : memref<8x36xbf16, #tpu.memory_space<vmem>>, vector<8x36xbf16>
    %c0_44 = arith.constant 0 : index
    %c0_45 = arith.constant 0 : index
    %42 = vector.load %arg9[%c0_44, %c0_45] : memref<36x512xbf16, #tpu.memory_space<vmem>>, vector<36x512xbf16>
    %cst = arith.constant dense<0.000000e+00> : vector<8x512xf32>
    %43 = tpu.matmul %41, %42, %cst {dimension_numbers = #tpu.dot_dimension_numbers<[1], [0], [0], [1], [0, 0, 1, 1], [], []>} : vector<8x36xbf16>, vector<36x512xbf16>, vector<8x512xf32> -> vector<8x512xf32>
    %c0_46 = arith.constant 0 : index
    %c0_47 = arith.constant 0 : index
    %44 = vector.load %arg4[%c0_46, %c0_47] : memref<8x1xf32, #tpu.memory_space<vmem>>, vector<8x1xf32>
    %45 = vector.broadcast %44 : vector<8x1xf32> to vector<8x512xf32>
    %46 = arith.addf %43, %45 : vector<8x512xf32>
    %cst_48 = arith.constant 0.000000e+00 : f32
    %47 = vector.broadcast %cst_48 : f32 to vector<8x512xf32>
    %48 = arith.maximumf %46, %47 : vector<8x512xf32>
    %c0_49 = arith.constant 0 : index
    %c0_50 = arith.constant 0 : index
    %c0_51 = arith.constant 0 : index
    %49 = vector.load %arg7[%c0_49, %c0_50, %c0_51] : memref<1x8x512xf32, #tpu.memory_space<vmem>>, vector<1x8x512xf32>
    %50 = vector.shape_cast %49 : vector<1x8x512xf32> to vector<8x512xf32>
    %51 = vector.shape_cast %48 : vector<8x512xf32> to vector<1x8x512xf32>
    tpu.vector_store %arg7[%c0_49, %c0_50, %c0_51], %51 {strides = array<i32>} : memref<1x8x512xf32, #tpu.memory_space<vmem>>, vector<1x8x512xf32>,
    %52 = vector.extract_strided_slice %48 {offsets = [0, 0], sizes = [8, 32], strides = [1, 1]} : vector<8x512xf32> to vector<8x32xf32>
    %53 = vector.extract_strided_slice %48 {offsets = [0, 32], sizes = [8, 32], strides = [1, 1]} : vector<8x512xf32> to vector<8x32xf32>
    %54 = arith.maximumf %52, %53 : vector<8x32xf32>
    %c0_52 = arith.constant 0 : index
    %c0_53 = arith.constant 0 : index
    %55 = vector.load %arg6[%c0_52, %c0_53] : memref<32x32xf32, #tpu.memory_space<vmem>>, vector<32x32xf32>
    %cst_54 = arith.constant dense<0.000000e+00> : vector<8x32xf32>
    %56 = tpu.matmul %54, %55, %cst_54 {dimension_numbers = #tpu.dot_dimension_numbers<[1], [0], [0], [1], [0, 0, 1, 1], [], []>} : vector<8x32xf32>, vector<32x32xf32>, vector<8x32xf32> -> vector<8x32xf32>
    %57 = vector.extract_strided_slice %56 {offsets = [0, 0], sizes = [8, 16], strides = [1, 1]} : vector<8x32xf32> to vector<8x16xf32>
    %58 = vector.extract_strided_slice %56 {offsets = [0, 16], sizes = [8, 16], strides = [1, 1]} : vector<8x32xf32> to vector<8x16xf32>
    %59 = arith.maximumf %57, %58 : vector<8x16xf32>
    %c0_55 = arith.constant 0 : index
    %c0_56 = arith.constant 0 : index
    %c0_57 = arith.constant 0 : index
    %60 = vector.load %arg8[%c0_55, %c0_56, %c0_57] : memref<1x8x128xf32, #tpu.memory_space<vmem>>, vector<1x8x16xf32>
    %61 = vector.shape_cast %60 : vector<1x8x16xf32> to vector<8x16xf32>
    %62 = vector.shape_cast %59 : vector<8x16xf32> to vector<1x8x16xf32>
    tpu.vector_store %arg8[%c0_55, %c0_56, %c0_57], %62 {strides = array<i32>} : memref<1x8x128xf32, #tpu.memory_space<vmem>>, vector<1x8x16xf32>,
    %63 = vector.extract_strided_slice %48 {offsets = [0, 64], sizes = [8, 32], strides = [1, 1]} : vector<8x512xf32> to vector<8x32xf32>
    %64 = vector.extract_strided_slice %48 {offsets = [0, 96], sizes = [8, 32], strides = [1, 1]} : vector<8x512xf32> to vector<8x32xf32>
    %65 = arith.maximumf %63, %64 : vector<8x32xf32>
    %c0_58 = arith.constant 0 : index
    %c0_59 = arith.constant 0 : index
    %66 = vector.load %arg6[%c0_58, %c0_59] : memref<32x32xf32, #tpu.memory_space<vmem>>, vector<32x32xf32>
    %cst_60 = arith.constant dense<0.000000e+00> : vector<8x32xf32>
    %67 = tpu.matmul %65, %66, %cst_60 {dimension_numbers = #tpu.dot_dimension_numbers<[1], [0], [0], [1], [0, 0, 1, 1], [], []>} : vector<8x32xf32>, vector<32x32xf32>, vector<8x32xf32> -> vector<8x32xf32>
    %68 = vector.extract_strided_slice %67 {offsets = [0, 0], sizes = [8, 16], strides = [1, 1]} : vector<8x32xf32> to vector<8x16xf32>
    %69 = vector.extract_strided_slice %67 {offsets = [0, 16], sizes = [8, 16], strides = [1, 1]} : vector<8x32xf32> to vector<8x16xf32>
    %70 = arith.maximumf %68, %69 : vector<8x16xf32>
    %c0_61 = arith.constant 0 : index
    %c0_62 = arith.constant 0 : index
    %c16_63 = arith.constant 16 : index
    %71 = vector.load %arg8[%c0_61, %c0_62, %c16_63] : memref<1x8x128xf32, #tpu.memory_space<vmem>>, vector<1x8x16xf32>
    %72 = vector.shape_cast %71 : vector<1x8x16xf32> to vector<8x16xf32>
    %73 = vector.shape_cast %70 : vector<8x16xf32> to vector<1x8x16xf32>
    tpu.vector_store %arg8[%c0_61, %c0_62, %c16_63], %73 {strides = array<i32>} : memref<1x8x128xf32, #tpu.memory_space<vmem>>, vector<1x8x16xf32>,
    %74 = vector.extract_strided_slice %48 {offsets = [0, 128], sizes = [8, 32], strides = [1, 1]} : vector<8x512xf32> to vector<8x32xf32>
    %75 = vector.extract_strided_slice %48 {offsets = [0, 160], sizes = [8, 32], strides = [1, 1]} : vector<8x512xf32> to vector<8x32xf32>
    %76 = arith.maximumf %74, %75 : vector<8x32xf32>
    %c0_64 = arith.constant 0 : index
    %c0_65 = arith.constant 0 : index
    %77 = vector.load %arg6[%c0_64, %c0_65] : memref<32x32xf32, #tpu.memory_space<vmem>>, vector<32x32xf32>
    %cst_66 = arith.constant dense<0.000000e+00> : vector<8x32xf32>
    %78 = tpu.matmul %76, %77, %cst_66 {dimension_numbers = #tpu.dot_dimension_numbers<[1], [0], [0], [1], [0, 0, 1, 1], [], []>} : vector<8x32xf32>, vector<32x32xf32>, vector<8x32xf32> -> vector<8x32xf32>
    %79 = vector.extract_strided_slice %78 {offsets = [0, 0], sizes = [8, 16], strides = [1, 1]} : vector<8x32xf32> to vector<8x16xf32>
    %80 = vector.extract_strided_slice %78 {offsets = [0, 16], sizes = [8, 16], strides = [1, 1]} : vector<8x32xf32> to vector<8x16xf32>
    %81 = arith.maximumf %79, %80 : vector<8x16xf32>
    %c0_67 = arith.constant 0 : index
    %c0_68 = arith.constant 0 : index
    %c32_69 = arith.constant 32 : index
    %82 = vector.load %arg8[%c0_67, %c0_68, %c32_69] : memref<1x8x128xf32, #tpu.memory_space<vmem>>, vector<1x8x16xf32>
    %83 = vector.shape_cast %82 : vector<1x8x16xf32> to vector<8x16xf32>
    %84 = vector.shape_cast %81 : vector<8x16xf32> to vector<1x8x16xf32>
    tpu.vector_store %arg8[%c0_67, %c0_68, %c32_69], %84 {strides = array<i32>} : memref<1x8x128xf32, #tpu.memory_space<vmem>>, vector<1x8x16xf32>,
    %85 = vector.extract_strided_slice %48 {offsets = [0, 192], sizes = [8, 32], strides = [1, 1]} : vector<8x512xf32> to vector<8x32xf32>
    %86 = vector.extract_strided_slice %48 {offsets = [0, 224], sizes = [8, 32], strides = [1, 1]} : vector<8x512xf32> to vector<8x32xf32>
    %87 = arith.maximumf %85, %86 : vector<8x32xf32>
    %c0_70 = arith.constant 0 : index
    %c0_71 = arith.constant 0 : index
    %88 = vector.load %arg6[%c0_70, %c0_71] : memref<32x32xf32, #tpu.memory_space<vmem>>, vector<32x32xf32>
    %cst_72 = arith.constant dense<0.000000e+00> : vector<8x32xf32>
    %89 = tpu.matmul %87, %88, %cst_72 {dimension_numbers = #tpu.dot_dimension_numbers<[1], [0], [0], [1], [0, 0, 1, 1], [], []>} : vector<8x32xf32>, vector<32x32xf32>, vector<8x32xf32> -> vector<8x32xf32>
    %90 = vector.extract_strided_slice %89 {offsets = [0, 0], sizes = [8, 16], strides = [1, 1]} : vector<8x32xf32> to vector<8x16xf32>
    %91 = vector.extract_strided_slice %89 {offsets = [0, 16], sizes = [8, 16], strides = [1, 1]} : vector<8x32xf32> to vector<8x16xf32>
    %92 = arith.maximumf %90, %91 : vector<8x16xf32>
    %c0_73 = arith.constant 0 : index
    %c0_74 = arith.constant 0 : index
    %c48 = arith.constant 48 : index
    %93 = vector.load %arg8[%c0_73, %c0_74, %c48] : memref<1x8x128xf32, #tpu.memory_space<vmem>>, vector<1x8x16xf32>
    %94 = vector.shape_cast %93 : vector<1x8x16xf32> to vector<8x16xf32>
    %95 = vector.shape_cast %92 : vector<8x16xf32> to vector<1x8x16xf32>
    tpu.vector_store %arg8[%c0_73, %c0_74, %c48], %95 {strides = array<i32>} : memref<1x8x128xf32, #tpu.memory_space<vmem>>, vector<1x8x16xf32>,
    %96 = vector.extract_strided_slice %48 {offsets = [0, 256], sizes = [8, 32], strides = [1, 1]} : vector<8x512xf32> to vector<8x32xf32>
    %97 = vector.extract_strided_slice %48 {offsets = [0, 288], sizes = [8, 32], strides = [1, 1]} : vector<8x512xf32> to vector<8x32xf32>
    %98 = arith.maximumf %96, %97 : vector<8x32xf32>
    %c0_75 = arith.constant 0 : index
    %c0_76 = arith.constant 0 : index
    %99 = vector.load %arg6[%c0_75, %c0_76] : memref<32x32xf32, #tpu.memory_space<vmem>>, vector<32x32xf32>
    %cst_77 = arith.constant dense<0.000000e+00> : vector<8x32xf32>
    %100 = tpu.matmul %98, %99, %cst_77 {dimension_numbers = #tpu.dot_dimension_numbers<[1], [0], [0], [1], [0, 0, 1, 1], [], []>} : vector<8x32xf32>, vector<32x32xf32>, vector<8x32xf32> -> vector<8x32xf32>
    %101 = vector.extract_strided_slice %100 {offsets = [0, 0], sizes = [8, 16], strides = [1, 1]} : vector<8x32xf32> to vector<8x16xf32>
    %102 = vector.extract_strided_slice %100 {offsets = [0, 16], sizes = [8, 16], strides = [1, 1]} : vector<8x32xf32> to vector<8x16xf32>
    %103 = arith.maximumf %101, %102 : vector<8x16xf32>
    %c0_78 = arith.constant 0 : index
    %c0_79 = arith.constant 0 : index
    %c64_80 = arith.constant 64 : index
    %104 = vector.load %arg8[%c0_78, %c0_79, %c64_80] : memref<1x8x128xf32, #tpu.memory_space<vmem>>, vector<1x8x16xf32>
    %105 = vector.shape_cast %104 : vector<1x8x16xf32> to vector<8x16xf32>
    %106 = vector.shape_cast %103 : vector<8x16xf32> to vector<1x8x16xf32>
    tpu.vector_store %arg8[%c0_78, %c0_79, %c64_80], %106 {strides = array<i32>} : memref<1x8x128xf32, #tpu.memory_space<vmem>>, vector<1x8x16xf32>,
    %107 = vector.extract_strided_slice %48 {offsets = [0, 320], sizes = [8, 32], strides = [1, 1]} : vector<8x512xf32> to vector<8x32xf32>
    %108 = vector.extract_strided_slice %48 {offsets = [0, 352], sizes = [8, 32], strides = [1, 1]} : vector<8x512xf32> to vector<8x32xf32>
    %109 = arith.maximumf %107, %108 : vector<8x32xf32>
    %c0_81 = arith.constant 0 : index
    %c0_82 = arith.constant 0 : index
    %110 = vector.load %arg6[%c0_81, %c0_82] : memref<32x32xf32, #tpu.memory_space<vmem>>, vector<32x32xf32>
    %cst_83 = arith.constant dense<0.000000e+00> : vector<8x32xf32>
    %111 = tpu.matmul %109, %110, %cst_83 {dimension_numbers = #tpu.dot_dimension_numbers<[1], [0], [0], [1], [0, 0, 1, 1], [], []>} : vector<8x32xf32>, vector<32x32xf32>, vector<8x32xf32> -> vector<8x32xf32>
    %112 = vector.extract_strided_slice %111 {offsets = [0, 0], sizes = [8, 16], strides = [1, 1]} : vector<8x32xf32> to vector<8x16xf32>
    %113 = vector.extract_strided_slice %111 {offsets = [0, 16], sizes = [8, 16], strides = [1, 1]} : vector<8x32xf32> to vector<8x16xf32>
    %114 = arith.maximumf %112, %113 : vector<8x16xf32>
    %c0_84 = arith.constant 0 : index
    %c0_85 = arith.constant 0 : index
    %c80 = arith.constant 80 : index
    %115 = vector.load %arg8[%c0_84, %c0_85, %c80] : memref<1x8x128xf32, #tpu.memory_space<vmem>>, vector<1x8x16xf32>
    %116 = vector.shape_cast %115 : vector<1x8x16xf32> to vector<8x16xf32>
    %117 = vector.shape_cast %114 : vector<8x16xf32> to vector<1x8x16xf32>
    tpu.vector_store %arg8[%c0_84, %c0_85, %c80], %117 {strides = array<i32>} : memref<1x8x128xf32, #tpu.memory_space<vmem>>, vector<1x8x16xf32>,
    %118 = vector.extract_strided_slice %48 {offsets = [0, 384], sizes = [8, 32], strides = [1, 1]} : vector<8x512xf32> to vector<8x32xf32>
    %119 = vector.extract_strided_slice %48 {offsets = [0, 416], sizes = [8, 32], strides = [1, 1]} : vector<8x512xf32> to vector<8x32xf32>
    %120 = arith.maximumf %118, %119 : vector<8x32xf32>
    %c0_86 = arith.constant 0 : index
    %c0_87 = arith.constant 0 : index
    %121 = vector.load %arg6[%c0_86, %c0_87] : memref<32x32xf32, #tpu.memory_space<vmem>>, vector<32x32xf32>
    %cst_88 = arith.constant dense<0.000000e+00> : vector<8x32xf32>
    %122 = tpu.matmul %120, %121, %cst_88 {dimension_numbers = #tpu.dot_dimension_numbers<[1], [0], [0], [1], [0, 0, 1, 1], [], []>} : vector<8x32xf32>, vector<32x32xf32>, vector<8x32xf32> -> vector<8x32xf32>
    %123 = vector.extract_strided_slice %122 {offsets = [0, 0], sizes = [8, 16], strides = [1, 1]} : vector<8x32xf32> to vector<8x16xf32>
    %124 = vector.extract_strided_slice %122 {offsets = [0, 16], sizes = [8, 16], strides = [1, 1]} : vector<8x32xf32> to vector<8x16xf32>
    %125 = arith.maximumf %123, %124 : vector<8x16xf32>
    %c0_89 = arith.constant 0 : index
    %c0_90 = arith.constant 0 : index
    %c96 = arith.constant 96 : index
    %126 = vector.load %arg8[%c0_89, %c0_90, %c96] : memref<1x8x128xf32, #tpu.memory_space<vmem>>, vector<1x8x16xf32>
    %127 = vector.shape_cast %126 : vector<1x8x16xf32> to vector<8x16xf32>
    %128 = vector.shape_cast %125 : vector<8x16xf32> to vector<1x8x16xf32>
    tpu.vector_store %arg8[%c0_89, %c0_90, %c96], %128 {strides = array<i32>} : memref<1x8x128xf32, #tpu.memory_space<vmem>>, vector<1x8x16xf32>,
    %129 = vector.extract_strided_slice %48 {offsets = [0, 448], sizes = [8, 32], strides = [1, 1]} : vector<8x512xf32> to vector<8x32xf32>
    %130 = vector.extract_strided_slice %48 {offsets = [0, 480], sizes = [8, 32], strides = [1, 1]} : vector<8x512xf32> to vector<8x32xf32>
    %131 = arith.maximumf %129, %130 : vector<8x32xf32>
    %c0_91 = arith.constant 0 : index
    %c0_92 = arith.constant 0 : index
    %132 = vector.load %arg6[%c0_91, %c0_92] : memref<32x32xf32, #tpu.memory_space<vmem>>, vector<32x32xf32>
    %cst_93 = arith.constant dense<0.000000e+00> : vector<8x32xf32>
    %133 = tpu.matmul %131, %132, %cst_93 {dimension_numbers = #tpu.dot_dimension_numbers<[1], [0], [0], [1], [0, 0, 1, 1], [], []>} : vector<8x32xf32>, vector<32x32xf32>, vector<8x32xf32> -> vector<8x32xf32>
    %134 = vector.extract_strided_slice %133 {offsets = [0, 0], sizes = [8, 16], strides = [1, 1]} : vector<8x32xf32> to vector<8x16xf32>
    %135 = vector.extract_strided_slice %133 {offsets = [0, 16], sizes = [8, 16], strides = [1, 1]} : vector<8x32xf32> to vector<8x16xf32>
    %136 = arith.maximumf %134, %135 : vector<8x16xf32>
    %c0_94 = arith.constant 0 : index
    %c0_95 = arith.constant 0 : index
    %c112 = arith.constant 112 : index
    %137 = vector.load %arg8[%c0_94, %c0_95, %c112] : memref<1x8x128xf32, #tpu.memory_space<vmem>>, vector<1x8x16xf32>
    %138 = vector.shape_cast %137 : vector<1x8x16xf32> to vector<8x16xf32>
    %139 = vector.shape_cast %136 : vector<8x16xf32> to vector<1x8x16xf32>
    tpu.vector_store %arg8[%c0_94, %c0_95, %c112], %139 {strides = array<i32>} : memref<1x8x128xf32, #tpu.memory_space<vmem>>, vector<1x8x16xf32>,
    return
  }
  func.func @transform_0(%arg0: i32, %arg1: i32) -> (i32, i32, i32, i32) {
    %c0_i32 = arith.constant 0 : i32
    %c0_i32_0 = arith.constant 0 : i32
    %c0_i32_1 = arith.constant 0 : i32
    return %arg0, %arg1, %c0_i32, %c0_i32_0 : i32, i32, i32, i32
  }
  func.func @transform_1(%arg0: i32, %arg1: i32) -> (i32, i32) {
    %c0_i32 = arith.constant 0 : i32
    %c0_i32_0 = arith.constant 0 : i32
    %c0_i32_1 = arith.constant 0 : i32
    return %c0_i32, %c0_i32_0 : i32, i32
  }
  func.func @transform_2(%arg0: i32, %arg1: i32) -> (i32, i32) {
    %c0_i32 = arith.constant 0 : i32
    %c0_i32_0 = arith.constant 0 : i32
    %c0_i32_1 = arith.constant 0 : i32
    return %c0_i32, %c0_i32_0 : i32, i32
  }
  func.func @transform_3(%arg0: i32, %arg1: i32) -> (i32, i32) {
    %c0_i32 = arith.constant 0 : i32
    %c0_i32_0 = arith.constant 0 : i32
    %c0_i32_1 = arith.constant 0 : i32
    return %c0_i32, %c0_i32_0 : i32, i32
  }
  func.func @transform_4(%arg0: i32, %arg1: i32) -> (i32, i32) {
    %c0_i32 = arith.constant 0 : i32
    %c0_i32_0 = arith.constant 0 : i32
    %c0_i32_1 = arith.constant 0 : i32
    return %c0_i32, %c0_i32_0 : i32, i32
  }
  func.func @transform_5(%arg0: i32, %arg1: i32) -> (i32, i32, i32) {
    %c0_i32 = arith.constant 0 : i32
    %c0_i32_0 = arith.constant 0 : i32
    return %arg0, %c0_i32, %arg1 : i32, i32, i32
  }
  func.func @transform_6(%arg0: i32, %arg1: i32) -> (i32, i32, i32) {
    %c0_i32 = arith.constant 0 : i32
    %c0_i32_0 = arith.constant 0 : i32
    return %arg0, %c0_i32, %arg1 : i32, i32, i32
  }
}

</mosaic_0001>

<llo_original>
// kernel: tpu_custom_call.1
$region0: #{tpu_custom_call.1}
  #allocation0 [shape = 'u32[]', space=smem, size = 0x4, offset = 0x4, fixed_abs, tag = 'smem constant byte address 0x4 - core index']
  #allocation1 [shape = 'u32[144,128]{1,0:T(1,128)}', space=vmem, size = 0x12000, scoped, tag = 'internal scratch']
  #allocation2 [shape = 'bf16[36,512]{1,0:T(8,128)(2,1)}', space=vmem, size = 0xa000, scoped, tag = 'scratch operand']
  %s0 = inlined_call_operand.hbm [shape: bf16[2,2,4,578], index: 0, kind: input, shape index: {}]
  %s1 = inlined_call_operand.vmem [shape: bf16[8,36], index: 1, kind: input, shape index: {}]
  %s2 = inlined_call_operand.vmem [shape: f32[8,1], index: 2, kind: input, shape index: {}]
  %s3 = inlined_call_operand.vmem [shape: bf16[2,512], index: 3, kind: input, shape index: {}]
  %s4 = inlined_call_operand.hbm [shape: f32[32,32], index: 4, kind: input, shape index: {}]
  %s5 = inlined_call_operand.hbm [shape: f32[2,8,1024], index: 5, kind: output, shape index: {0}]
  %s6 = inlined_call_operand.hbm [shape: f32[2,8,256], index: 6, kind: output, shape index: {1}]
  %7 = xla_tuple %s5, %s6
  %s8 = sld [smem:[#allocation0]]
  $region69: #{tpu_custom_call.1} parent=0
    _
  %s10 = ssub.s32 1, %s8
  %s11 = scalar_select 0, %s10, %s8
  $region1: #{tpu_custom_call.1} parent=0
    #allocation3 [shape = 'u8[10240]{0}', space=vmem, size = 0x2800, scoped, tag = 'input window, operand 0']
    #allocation4 [shape = 's32[2]{0}', space=sflag, size = 0x8, scoped, tag = 'scoped memory for tpu_custom_call.1']
    #allocation5 [shape = 's32[2]{0}', space=sflag, size = 0x8, scoped, tag = 'scoped memory for tpu_custom_call.1']
    #allocation6 [shape = 'u8[16384]{0}', space=vmem, size = 0x4000, scoped, tag = 'input window, operand 4, single buffered']
    #allocation7 [shape = 's32[1]{0}', space=sflag, size = 0x4, scoped, tag = 'scoped memory for tpu_custom_call.1']
    #allocation8 [shape = 'u8[32768]{0}', space=vmem, size = 0x8000, scoped, tag = 'output window, operand 0']
    #allocation9 [shape = 'u8[8192]{0}', space=vmem, size = 0x2000, scoped, tag = 'output window, operand 1']
    #allocation10 [shape = 's32[2]{0}', space=sflag, size = 0x8, scoped, tag = 'scoped memory for tpu_custom_call.1']
    %12 = vsyncpa [#allocation4], 0
    %s13 = scalar_lea.sflag [#allocation4], 1
    %14 = vsyncpa %s13, 0
    %15 = vsyncpa [#allocation7], 0
    %16 = vsyncpa [#allocation5], 0
    %s17 = scalar_lea.sflag [#allocation5], 1
    %18 = vsyncpa %s17, 0
    %19 = vsyncpa [#allocation10], 0
    %s20 = scalar_lea.sflag [#allocation10], 1
    %21 = vsyncpa %s20, 0
    loop: start=0, step=1, limit=6
    $region2: #{tpu_custom_call.1} parent=1 // loop_pre_header
      _
    $region3: #{tpu_custom_call.1} parent=1 // loop_header
      %s23 = sphi 0, %s27
      %p24 = scmp.ge.s32.totalorder %s23, 6
      %s30 = sphi 0, %s42
      %s31 = sphi 0, %s38
      %s32 = sphi 0, %s30
      %s33 = sphi 0, %s31
      %s34 = sphi 0, %s32
      %s35 = sphi 0, %s33
      %s47 = sphi 0, %s49
      %s50 = sphi 0, %s47
      %s51 = sphi 0, %s50
      %s67 = sphi 0, %s51
      %s71 = sphi 0, %s71
      %s73 = sphi 0, %s71
      %s74 = sphi 0, %s73
      %s88 = sphi 0, %s74
      %s92 = sphi 0, %s92
      %s94 = sphi 0, %s92
      %s95 = sphi 0, %s94
      %s109 = sphi 0, %s95
      %s113 = sphi 0, %s113
      %s115 = sphi 0, %s113
      %s116 = sphi 0, %s115
      %s130 = sphi 0, %s116
      %s134 = sphi 0, %s134
      %s136 = sphi 0, %s134
      %s137 = sphi 0, %s136
      %s151 = sphi 0, %s137
      %s159 = sphi 0, %s161
      %s162 = sphi 0, %s159
      %s163 = sphi 0, %s162
      %s179 = sphi 0, %s163
      %s187 = sphi 0, %s189
      %s190 = sphi 0, %s187
      %s191 = sphi 0, %s190
      %s207 = sphi 0, %s191
    $region4: #{tpu_custom_call.1} parent=1 // loop_header_branch
      %26 = sbr.rel (%p24) target = $region8
    $region5: #{tpu_custom_call.1} parent=1 // loop_body
      %s28 = ssub.s32 %s23, 1
      %s29 = ssub.s32 %s23, 2
      %s36 = sadd.s32 1, %s31
      %p37 = scmp.ge.s32.totalorder %s36, 2
      %s38 = scalar_select %p37, 0, %s36
      %s39 = sadd.s32 1, %s30
      %s40 = scalar_select %p37, %s39, %s30
      %p41 = scmp.ge.s32.totalorder %s40, 2
      %s42 = scalar_select %p41, 0, %s40
      %s43 = ssub.s32 %s30, %s42
      %s44 = ssub.s32 %s31, %s38
      %s45 = sor.u32 %s43, %s44
      %p46 = scmp.eq.s32.totalorder %s45, 0
      %s48 = sadd.s32 %s47, 1
      %s49 = scalar_select %p46, %s47, %s48
      %p52 = pneg %p46
      %p53 = scmp.eq.s32.totalorder %s23, 3
      %p54 = por %p52, %p53
      %p55 = scmp.ne.s32.totalorder %s47, %s50
      %p56 = scmp.eq.s32.totalorder %s23, 0
      %p57 = por %p55, %p56
      %p58 = scmp.ne.s32.totalorder %s47, %s50
      %p59 = scmp.eq.s32.totalorder %s28, 3
      %p60 = por %p58, %p59
      %p61 = scmp.ne.s32.totalorder %s50, %s51
      %p62 = scmp.eq.s32.totalorder %s28, 0
      %p63 = por %p61, %p62
      %p64 = scmp.ne.s32.totalorder %s50, %s51
      %p65 = scmp.eq.s32.totalorder %s29, 3
      %p66 = por %p64, %p65
      %p68 = scmp.ne.s32.totalorder %s51, %s67
      %p69 = scmp.eq.s32.totalorder %s29, 0
      %p70 = por %p68, %p69
      %s72 = sadd.s32 %s71, 1
      %p75 = scmp.eq.s32.totalorder %s23, 3
      %p76 = scmp.ne.s32.totalorder %s71, %s73
      %p77 = scmp.eq.s32.totalorder %s23, 0
      %p78 = por %p76, %p77
      %p79 = scmp.ne.s32.totalorder %s71, %s73
      %p80 = scmp.eq.s32.totalorder %s28, 3
      %p81 = por %p79, %p80
      %p82 = scmp.ne.s32.totalorder %s73, %s74
      %p83 = scmp.eq.s32.totalorder %s28, 0
      %p84 = por %p82, %p83
      %p85 = scmp.ne.s32.totalorder %s73, %s74
      %p86 = scmp.eq.s32.totalorder %s29, 3
      %p87 = por %p85, %p86
      %p89 = scmp.ne.s32.totalorder %s74, %s88
      %p90 = scmp.eq.s32.totalorder %s29, 0
      %p91 = por %p89, %p90
      %s93 = sadd.s32 %s92, 1
      %p96 = scmp.eq.s32.totalorder %s23, 3
      %p97 = scmp.ne.s32.totalorder %s92, %s94
      %p98 = scmp.eq.s32.totalorder %s23, 0
      %p99 = por %p97, %p98
      %p100 = scmp.ne.s32.totalorder %s92, %s94
      %p101 = scmp.eq.s32.totalorder %s28, 3
      %p102 = por %p100, %p101
      %p103 = scmp.ne.s32.totalorder %s94, %s95
      %p104 = scmp.eq.s32.totalorder %s28, 0
      %p105 = por %p103, %p104
      %p106 = scmp.ne.s32.totalorder %s94, %s95
      %p107 = scmp.eq.s32.totalorder %s29, 3
      %p108 = por %p106, %p107
      %p110 = scmp.ne.s32.totalorder %s95, %s109
      %p111 = scmp.eq.s32.totalorder %s29, 0
      %p112 = por %p110, %p111
      %s114 = sadd.s32 %s113, 1
      %p117 = scmp.eq.s32.totalorder %s23, 3
      %p118 = scmp.ne.s32.totalorder %s113, %s115
      %p119 = scmp.eq.s32.totalorder %s23, 0
      %p120 = por %p118, %p119
      %p121 = scmp.ne.s32.totalorder %s113, %s115
      %p122 = scmp.eq.s32.totalorder %s28, 3
      %p123 = por %p121, %p122
      %p124 = scmp.ne.s32.totalorder %s115, %s116
      %p125 = scmp.eq.s32.totalorder %s28, 0
      %p126 = por %p124, %p125
      %p127 = scmp.ne.s32.totalorder %s115, %s116
      %p128 = scmp.eq.s32.totalorder %s29, 3
      %p129 = por %p127, %p128
      %p131 = scmp.ne.s32.totalorder %s116, %s130
      %p132 = scmp.eq.s32.totalorder %s29, 0
      %p133 = por %p131, %p132
      %s135 = sadd.s32 %s134, 1
      %p138 = scmp.eq.s32.totalorder %s23, 3
      %p139 = scmp.ne.s32.totalorder %s134, %s136
      %p140 = scmp.eq.s32.totalorder %s23, 0
      %p141 = por %p139, %p140
      %p142 = scmp.ne.s32.totalorder %s134, %s136
      %p143 = scmp.eq.s32.totalorder %s28, 3
      %p144 = por %p142, %p143
      %p145 = scmp.ne.s32.totalorder %s136, %s137
      %p146 = scmp.eq.s32.totalorder %s28, 0
      %p147 = por %p145, %p146
      %p148 = scmp.ne.s32.totalorder %s136, %s137
      %p149 = scmp.eq.s32.totalorder %s29, 3
      %p150 = por %p148, %p149
      %p152 = scmp.ne.s32.totalorder %s137, %s151
      %p153 = scmp.eq.s32.totalorder %s29, 0
      %p154 = por %p152, %p153
      %s155 = ssub.s32 %s30, %s42
      %s156 = ssub.s32 %s31, %s38
      %s157 = sor.u32 %s155, %s156
      %p158 = scmp.eq.s32.totalorder %s157, 0
      %s160 = sadd.s32 %s159, 1
      %s161 = scalar_select %p158, %s159, %s160
      %p164 = pneg %p158
      %p165 = scmp.eq.s32.totalorder %s23, 3
      %p166 = por %p164, %p165
      %p167 = scmp.ne.s32.totalorder %s159, %s162
      %p168 = scmp.eq.s32.totalorder %s23, 0
      %p169 = por %p167, %p168
      %p170 = scmp.ne.s32.totalorder %s159, %s162
      %p171 = scmp.eq.s32.totalorder %s28, 3
      %p172 = por %p170, %p171
      %p173 = scmp.ne.s32.totalorder %s162, %s163
      %p174 = scmp.eq.s32.totalorder %s28, 0
      %p175 = por %p173, %p174
      %p176 = scmp.ne.s32.totalorder %s162, %s163
      %p177 = scmp.eq.s32.totalorder %s29, 3
      %p178 = por %p176, %p177
      %p180 = scmp.ne.s32.totalorder %s163, %s179
      %p181 = scmp.eq.s32.totalorder %s29, 0
      %p182 = por %p180, %p181
      %s183 = ssub.s32 %s30, %s42
      %s184 = ssub.s32 %s31, %s38
      %s185 = sor.u32 %s183, %s184
      %p186 = scmp.eq.s32.totalorder %s185, 0
      %s188 = sadd.s32 %s187, 1
      %s189 = scalar_select %p186, %s187, %s188
      %p192 = pneg %p186
      %p193 = scmp.eq.s32.totalorder %s23, 3
      %p194 = por %p192, %p193
      %p195 = scmp.ne.s32.totalorder %s187, %s190
      %p196 = scmp.eq.s32.totalorder %s23, 0
      %p197 = por %p195, %p196
      %p198 = scmp.ne.s32.totalorder %s187, %s190
      %p199 = scmp.eq.s32.totalorder %s28, 3
      %p200 = por %p198, %p199
      %p201 = scmp.ne.s32.totalorder %s190, %s191
      %p202 = scmp.eq.s32.totalorder %s28, 0
      %p203 = por %p201, %p202
      %p204 = scmp.ne.s32.totalorder %s190, %s191
      %p205 = scmp.eq.s32.totalorder %s29, 3
      %p206 = por %p204, %p205
      %p208 = scmp.ne.s32.totalorder %s191, %s207
      %p209 = scmp.eq.s32.totalorder %s29, 0
      %p210 = por %p208, %p209
      %p211 = scmp.le.s32.totalorder 1, %s23
      %p212 = scmp.lt.s32.totalorder %s23, 5
      %p213 = pnand %p211, %p212
      %p214 = pneg %p213
      // Predicated region
      $region9: #{tpu_custom_call.1} parent=5 // pred_check
        _
      $region10: #{tpu_custom_call.1} parent=5 // pred_check_branch
        %216 = sbr.rel (%p213) target = $region12
      $region11: #{tpu_custom_call.1} parent=5 // pred_region
        %s217 = ssub.s32 %s23, 1
        // Predicated region
        $region13: #{tpu_custom_call.1} parent=11 // pred_check
          %p218 = pneg %p84
        $region14: #{tpu_custom_call.1} parent=11 // pred_check_branch
          %220 = sbr.rel (%p218) target = $region16
        $region15: #{tpu_custom_call.1} parent=11 // pred_region
          _
        $region16: #{tpu_custom_call.1} parent=11 // pred_fallthru
          _
        // Predicated region
        $region17: #{tpu_custom_call.1} parent=11 // pred_check
          %p221 = pneg %p105
        $region18: #{tpu_custom_call.1} parent=11 // pred_check_branch
          %223 = sbr.rel (%p221) target = $region20
        $region19: #{tpu_custom_call.1} parent=11 // pred_region
          _
        $region20: #{tpu_custom_call.1} parent=11 // pred_fallthru
          _
        // Predicated region
        $region21: #{tpu_custom_call.1} parent=11 // pred_check
          %p224 = pneg %p126
        $region22: #{tpu_custom_call.1} parent=11 // pred_check_branch
          %226 = sbr.rel (%p224) target = $region24
        $region23: #{tpu_custom_call.1} parent=11 // pred_region
          _
        $region24: #{tpu_custom_call.1} parent=11 // pred_fallthru
          _
        // Predicated region
        $region25: #{tpu_custom_call.1} parent=11 // pred_check
          %p227 = pneg %p147
        $region26: #{tpu_custom_call.1} parent=11 // pred_check_branch
          %229 = sbr.rel (%p227) target = $region28
        $region27: #{tpu_custom_call.1} parent=11 // pred_region
          %s231 = ssub.s32 512, 512
          %232 = vsyncadd [#allocation7], %s231
          %s233 = sshll.u32 [#allocation6], 4
          %s234 = int_to_ptr.vmem [resolvable:$true] %s233
          %239 = dma.hbm_to_vmem [thread:$0]  %s4, 512, %s234, [#allocation7], 128, 128, 8
        $region28: #{tpu_custom_call.1} parent=11 // pred_fallthru
          _
      $region12: #{tpu_custom_call.1} parent=5 // pred_fallthru
        _
      %p240 = scmp.lt.s32.totalorder %s23, 4
      // Predicated region
      $region29: #{tpu_custom_call.1} parent=5 // pred_check
        %p241 = pneg %p240
      $region30: #{tpu_custom_call.1} parent=5 // pred_check_branch
        %243 = sbr.rel (%p241) target = $region32
      $region31: #{tpu_custom_call.1} parent=5 // pred_region
        // Predicated region
        $region33: #{tpu_custom_call.1} parent=31 // pred_check
          %p244 = pneg %p57
        $region34: #{tpu_custom_call.1} parent=31 // pred_check_branch
          %246 = sbr.rel (%p244) target = $region36
        $region35: #{tpu_custom_call.1} parent=31 // pred_region
          %s247 = sand.u32 %s47, 1
          %s248 = scalar_lea.sflag [#allocation4], %s247
          %s249 = sand.u32 %s47, 1
          %s250 = smul.addr %s249, 10
          %s251 = scalar_lea.vmem [#allocation3], %s250
          %s253 = ssub.s32 160, 160
          %254 = vsyncadd %s248, %s253
          %s255 = smul.addr %s31, 5
          %s256 = smul.addr %s30, 10
          %s257 = sadd.s32 %s255, %s256
          %s258 = smul.addr %s257, 32
          %s259 = scalar_lea.hbm %s0, %s258
          %s261 = sshll.u32 %s251, 4
          %s262 = int_to_ptr.vmem [resolvable:$true] %s261
          %264 = dma.hbm_to_vmem [thread:$0]  %s259, 160, %s262, %s248
        $region36: #{tpu_custom_call.1} parent=31 // pred_fallthru
          _
      $region32: #{tpu_custom_call.1} parent=5 // pred_fallthru
        _
      %p265 = scmp.le.s32.totalorder 1, %s23
      %p266 = scmp.lt.s32.totalorder %s23, 5
      %p267 = pnand %p265, %p266
      %p268 = pneg %p267
      // Predicated region
      $region37: #{tpu_custom_call.1} parent=5 // pred_check
        _
      $region38: #{tpu_custom_call.1} parent=5 // pred_check_branch
        %270 = sbr.rel (%p267) target = $region40
      $region39: #{tpu_custom_call.1} parent=5 // pred_region
        %s271 = ssub.s32 %s23, 1
        %s272 = sand.u32 %s50, 1
        %s273 = scalar_lea.sflag [#allocation4], %s272
        %s274 = sand.u32 %s50, 1
        %s275 = smul.addr %s274, 10
        %s276 = scalar_lea.vmem [#allocation3], %s275
        // Predicated region
        $region41: #{tpu_custom_call.1} parent=39 // pred_check
          %p277 = pneg %p63
        $region42: #{tpu_custom_call.1} parent=39 // pred_check_branch
          %279 = sbr.rel (%p277) target = $region44
        $region43: #{tpu_custom_call.1} parent=39 // pred_region
          %280 = dma.done %s273, 160
        $region44: #{tpu_custom_call.1} parent=39 // pred_fallthru
          _
        // Predicated region
        $region45: #{tpu_custom_call.1} parent=39 // pred_check
          %p281 = pneg %p147
        $region46: #{tpu_custom_call.1} parent=39 // pred_check_branch
          %283 = sbr.rel (%p281) target = $region48
        $region47: #{tpu_custom_call.1} parent=39 // pred_region
          %284 = dma.done [#allocation7], 512
        $region48: #{tpu_custom_call.1} parent=39 // pred_fallthru
          _
        %s285 = sand.u32 %s50, 1
        %s286 = scalar_lea.sflag [#allocation4], %s285
        %s287 = sand.u32 %s50, 1
        %s288 = smul.addr %s287, 10
        %s289 = scalar_lea.vmem [#allocation3], %s288
        %p290 = pneg %p63
        %p291 = pneg %p60
        %p292 = pneg %p84
        %p293 = pneg %p81
        %p294 = pneg %p105
        %p295 = pneg %p102
        %p296 = pneg %p126
        %p297 = pneg %p123
        %p298 = pneg %p147
        %p299 = pneg %p144
        %p300 = pneg %p175
        %p301 = pneg %p172
        %s302 = sand.u32 %s162, 1
        %s303 = scalar_lea.sflag [#allocation5], %s302
        %s304 = sand.u32 %s162, 1
        %s305 = smul.addr %s304, 32
        %s306 = scalar_lea.vmem [#allocation8], %s305
        %p307 = pneg %p203
        %p308 = pneg %p200
        %s309 = sand.u32 %s190, 1
        %s310 = scalar_lea.sflag [#allocation10], %s309
        %s311 = sand.u32 %s190, 1
        %s312 = smul.addr %s311, 8
        %s313 = scalar_lea.vmem [#allocation9], %s312
        %s314 = smul.u32 4, %s33
        %v316 = vld [vmem:[%s3] sm:$0xf]
        %v317 = vld [vmem:[%s276] sm:$0xff]
        %v320 = vunpack.c.l.s4 1966171168
        %v321 = vunpack.c.0.s8 %v320
        %v322 = vlaneseq
        %v323 = vshrl.u32 %v322, 7
        %v324 = vsub.s32 %v321, %v323
        %v325 = vrot.slane %v316, %v324
        %v326 = vcombine.high %v325, %v325
        %v328 = vunpack.c.l.s4 1966171168
        %v329 = vunpack.c.0.s8 %v328
        %v330 = vlaneseq
        %v331 = vshrl.u32 %v330, 7
        %v332 = vsub.s32 %v329, %v331
        %v333 = vrot.slane %v325, %v332
        %v335 = vunpack.c.l.s4 1966171168
        %v336 = vunpack.c.0.s8 %v335
        %v337 = vlaneseq
        %v338 = vshrl.u32 %v337, 7
        %v339 = vsub.s32 %v336, %v338
        %v340 = vrot.slane %v326, %v339
        %v341 = vcombine.high %v333, %v333
        %v342 = vcombine.high %v340, %v340
        %v344 = vpack.i.b16 %v333, %v333
        %v346 = vlaneseq
        %v347 = vshrl.u32 %v346, 7
        %v348 = vsub.s32 0, %v347
        %v349 = vrot.slane %v344, %v348
        %v351 = vpack.i.b16 %v340, %v340
        %v353 = vlaneseq
        %v354 = vshrl.u32 %v353, 7
        %v355 = vsub.s32 0, %v354
        %v356 = vrot.slane %v351, %v355
        %v358 = vpack.i.b16 %v341, %v341
        %v360 = vlaneseq
        %v361 = vshrl.u32 %v360, 7
        %v362 = vsub.s32 0, %v361
        %v363 = vrot.slane %v358, %v362
        %v365 = vpack.i.b16 %v342, %v342
        %v367 = vlaneseq
        %v368 = vshrl.u32 %v367, 7
        %v369 = vsub.s32 0, %v368
        %v370 = vrot.slane %v365, %v369
        %v375 = vcombine.low %v349, %v356
        %v376 = vcombine.low %v363, %v370
        %v378 = vunpack.c.l.s4 1983009808
        %v379 = vunpack.c.0.s8 %v378
        %v380 = vlaneseq
        %v381 = vshrl.u32 %v380, 7
        %v382 = vsub.s32 %v379, %v381
        %v383 = vrot.slane %v375, %v382
        %v385 = vunpack.c.l.s4 1983009808
        %v386 = vunpack.c.0.s8 %v385
        %v387 = vlaneseq
        %v388 = vshrl.u32 %v387, 7
        %v389 = vsub.s32 %v386, %v388
        %v390 = vrot.slane %v376, %v389
        %v391 = vcombine.low %v383, %v390
        %v393 = vmul.bf16 %v317, %v391
        %v395 = vcombine.high %v393, %v393
        %v397 = vunpack.c.l.s4 1983009808
        %v398 = vunpack.c.0.s8 %v397
        %v399 = vlaneseq
        %v400 = vshrl.u32 %v399, 7
        %v401 = vsub.s32 %v398, %v400
        %v402 = vrot.slane %v393, %v401
        %v404 = vunpack.c.l.s4 1983009808
        %v405 = vunpack.c.0.s8 %v404
        %v406 = vlaneseq
        %v407 = vshrl.u32 %v406, 7
        %v408 = vsub.s32 %v405, %v407
        %v409 = vrot.slane %v395, %v408
        %412 = vst [vmem:[#allocation2] sm:$0x33] %v402
        %413 = vst [vmem:[#allocation2 + $0x8] sm:$0x33] %v409
        %v414 = vld [vmem:[%s276] sm:$0xff]
        %v415 = vld [vmem:[%s276 + $0x8] sm:$0x3]
        %v418 = vcombine.low %v414, %v414
        %v420 = vunpack.c.l.s4 1983009808
        %v421 = vunpack.c.0.s8 %v420
        %v422 = vlaneseq
        %v423 = vshrl.u32 %v422, 7
        %v424 = vsub.s32 %v421, %v423
        %v425 = vrot.slane %v418, %v424
        %v427 = vunpack.c.l.s4 1983009808
        %v428 = vunpack.c.0.s8 %v427
        %v429 = vlaneseq
        %v430 = vshrl.u32 %v429, 7
        %v431 = vsub.s32 %v428, %v430
        %v432 = vrot.slane %v414, %v431
        %v433 = vcombine.low %v415, %v415
        %v435 = vunpack.c.l.s4 1983009808
        %v436 = vunpack.c.0.s8 %v435
        %v437 = vlaneseq
        %v438 = vshrl.u32 %v437, 7
        %v439 = vsub.s32 %v436, %v438
        %v440 = vrot.slane %v433, %v439
        %441 = vrot.lane.b32.xlu0 %v425, 127
        %v442 = vpop.permute.xlu0 %441
        %443 = vrot.lane.b32.xlu0 %v432, 127
        %v444 = vpop.permute.xlu0 %443
        %445 = vrot.lane.b32.xlu0 %v440, 127
        %v446 = vpop.permute.xlu0 %445
        %v447 = vrot.slane %v442, 4
        %v448 = vrot.slane %v444, 4
        %v449 = vrot.slane %v446, 4
        %vm450 = vcmask 1043456
        %v451 = vsel %vm450, %v447, %v448
        %vm452 = vcmask 1039360
        %v453 = vsel %vm452, %v442, %v451
        %v454 = vsel %vm450, %v448, %v449
        %v455 = vsel %vm452, %v444, %v454
        %458 = vst [vmem:[#allocation2] sm:$0xcc] %v453
        %459 = vst [vmem:[#allocation2 + $0x8] sm:$0xcc] %v455
        %v460 = vld [vmem:[%s276] sm:$0xff]
        %v461 = vld [vmem:[%s276 + $0x8] sm:$0x3]
        %v462 = vshrl.u32 %v333, 16
        %v463 = vpack.i.b16 %v462, %v462
        %v465 = vlaneseq
        %v466 = vshrl.u32 %v465, 7
        %v467 = vsub.s32 0, %v466
        %v468 = vrot.slane %v463, %v467
        %v469 = vshrl.u32 %v340, 16
        %v470 = vpack.i.b16 %v469, %v469
        %v472 = vlaneseq
        %v473 = vshrl.u32 %v472, 7
        %v474 = vsub.s32 0, %v473
        %v475 = vrot.slane %v470, %v474
        %v476 = vshrl.u32 %v341, 16
        %v477 = vpack.i.b16 %v476, %v476
        %v479 = vlaneseq
        %v480 = vshrl.u32 %v479, 7
        %v481 = vsub.s32 0, %v480
        %v482 = vrot.slane %v477, %v481
        %v483 = vshrl.u32 %v342, 16
        %v484 = vpack.i.b16 %v483, %v483
        %v486 = vlaneseq
        %v487 = vshrl.u32 %v486, 7
        %v488 = vsub.s32 0, %v487
        %v489 = vrot.slane %v484, %v488
        %v494 = vcombine.low %v468, %v475
        %v495 = vcombine.low %v482, %v489
        %v497 = vunpack.c.l.s4 1983009808
        %v498 = vunpack.c.0.s8 %v497
        %v499 = vlaneseq
        %v500 = vshrl.u32 %v499, 7
        %v501 = vsub.s32 %v498, %v500
        %v502 = vrot.slane %v494, %v501
        %v504 = vunpack.c.l.s4 1983009808
        %v505 = vunpack.c.0.s8 %v504
        %v506 = vlaneseq
        %v507 = vshrl.u32 %v506, 7
        %v508 = vsub.s32 %v505, %v507
        %v509 = vrot.slane %v495, %v508
        %v510 = vcombine.low %v502, %v509
        %511 = vrot.lane.b32.xlu0 %v510, 2
        %v512 = vpop.permute.xlu0 %511
        %v513 = vrot.slane %v512, 6
        %vm514 = vcmask 15360
        %v515 = vsel %vm514, %v513, %v512
        %v518 = vmul.bf16 %v460, %v515
        %v519 = vmul.bf16 %v461, %v513
        %v522 = vcombine.high %v518, %v518
        %v524 = vunpack.c.l.s4 1983009808
        %v525 = vunpack.c.0.s8 %v524
        %v526 = vlaneseq
        %v527 = vshrl.u32 %v526, 7
        %v528 = vsub.s32 %v525, %v527
        %v529 = vrot.slane %v518, %v528
        %v531 = vunpack.c.l.s4 1983009808
        %v532 = vunpack.c.0.s8 %v531
        %v533 = vlaneseq
        %v534 = vshrl.u32 %v533, 7
        %v535 = vsub.s32 %v532, %v534
        %v536 = vrot.slane %v522, %v535
        %v538 = vunpack.c.l.s4 1983009808
        %v539 = vunpack.c.0.s8 %v538
        %v540 = vlaneseq
        %v541 = vshrl.u32 %v540, 7
        %v542 = vsub.s32 %v539, %v541
        %v543 = vrot.slane %v519, %v542
        %544 = vrot.lane.b32.xlu0 %v529, 126
        %v545 = vpop.permute.xlu0 %544
        %546 = vrot.lane.b32.xlu0 %v536, 126
        %v547 = vpop.permute.xlu0 %546
        %548 = vrot.lane.b32.xlu0 %v543, 126
        %v549 = vpop.permute.xlu0 %548
        %v550 = vrot.slane %v545, 4
        %v551 = vrot.slane %v547, 4
        %v552 = vrot.slane %v549, 4
        %v553 = vsel %vm450, %v550, %v551
        %vm554 = vcmask 1031168
        %v555 = vsel %vm554, %v545, %v553
        %v556 = vsel %vm450, %v551, %v552
        %v557 = vsel %vm554, %v547, %v556
        %560 = vst [vmem:[#allocation2 + $0x10] sm:$0x33] %v555
        %561 = vst [vmem:[#allocation2 + $0x18] sm:$0x33] %v557
        %v562 = vld [vmem:[%s276] sm:$0xff]
        %v563 = vld [vmem:[%s276 + $0x8] sm:$0x3]
        %564 = vrot.lane.b32.xlu0 %v391, 32
        %v565 = vpop.permute.xlu0 %564
        %v566 = vrot.slane %v565, 6
        %vm567 = vcmask 261120
        %v568 = vsel %vm567, %v566, %v565
        %v571 = vmul.bf16 %v562, %v568
        %v572 = vmul.bf16 %v563, %v566
        %v575 = vcombine.low %v571, %v571
        %v577 = vunpack.c.l.s4 1983009808
        %v578 = vunpack.c.0.s8 %v577
        %v579 = vlaneseq
        %v580 = vshrl.u32 %v579, 7
        %v581 = vsub.s32 %v578, %v580
        %v582 = vrot.slane %v575, %v581
        %v584 = vunpack.c.l.s4 1983009808
        %v585 = vunpack.c.0.s8 %v584
        %v586 = vlaneseq
        %v587 = vshrl.u32 %v586, 7
        %v588 = vsub.s32 %v585, %v587
        %v589 = vrot.slane %v571, %v588
        %v590 = vcombine.low %v572, %v572
        %v592 = vunpack.c.l.s4 1983009808
        %v593 = vunpack.c.0.s8 %v592
        %v594 = vlaneseq
        %v595 = vshrl.u32 %v594, 7
        %v596 = vsub.s32 %v593, %v595
        %v597 = vrot.slane %v590, %v596
        %598 = vrot.lane.b32.xlu0 %v582, 96
        %v599 = vpop.permute.xlu0 %598
        %600 = vrot.lane.b32.xlu0 %v589, 96
        %v601 = vpop.permute.xlu0 %600
        %602 = vrot.lane.b32.xlu0 %v597, 96
        %v603 = vpop.permute.xlu0 %602
        %v604 = vrot.slane %v599, 4
        %v605 = vrot.slane %v601, 4
        %v606 = vrot.slane %v603, 4
        %v607 = vsel %vm450, %v604, %v605
        %vm608 = vcmask 785408
        %v609 = vsel %vm608, %v599, %v607
        %v610 = vsel %vm450, %v605, %v606
        %v611 = vsel %vm608, %v601, %v610
        %614 = vst [vmem:[#allocation2 + $0x10] sm:$0xcc] %v609
        %615 = vst [vmem:[#allocation2 + $0x18] sm:$0xcc] %v611
        %v616 = vld [vmem:[%s276] sm:$0xff]
        %v617 = vld [vmem:[%s276 + $0x8] sm:$0x3]
        %v620 = vcombine.high %v616, %v616
        %v622 = vunpack.c.l.s4 1983009808
        %v623 = vunpack.c.0.s8 %v622
        %v624 = vlaneseq
        %v625 = vshrl.u32 %v624, 7
        %v626 = vsub.s32 %v623, %v625
        %v627 = vrot.slane %v616, %v626
        %v629 = vunpack.c.l.s4 1983009808
        %v630 = vunpack.c.0.s8 %v629
        %v631 = vlaneseq
        %v632 = vshrl.u32 %v631, 7
        %v633 = vsub.s32 %v630, %v632
        %v634 = vrot.slane %v620, %v633
        %v636 = vunpack.c.l.s4 1983009808
        %v637 = vunpack.c.0.s8 %v636
        %v638 = vlaneseq
        %v639 = vshrl.u32 %v638, 7
        %v640 = vsub.s32 %v637, %v639
        %v641 = vrot.slane %v617, %v640
        %642 = vrot.lane.b32.xlu0 %v627, 95
        %v643 = vpop.permute.xlu0 %642
        %644 = vrot.lane.b32.xlu0 %v634, 95
        %v645 = vpop.permute.xlu0 %644
        %646 = vrot.lane.b32.xlu0 %v641, 95
        %v647 = vpop.permute.xlu0 %646
        %v648 = vrot.slane %v643, 4
        %v649 = vrot.slane %v645, 4
        %v650 = vrot.slane %v647, 4
        %v651 = vsel %vm450, %v648, %v649
        %vm652 = vcmask 777216
        %v653 = vsel %vm652, %v643, %v651
        %v654 = vsel %vm450, %v649, %v650
        %v655 = vsel %vm652, %v645, %v654
        %658 = vst [vmem:[#allocation2 + $0x20] sm:$0x33] %v653
        %659 = vst [vmem:[#allocation2 + $0x28] sm:$0x33] %v655
        %v660 = vld [vmem:[%s276] sm:$0xff]
        %v661 = vld [vmem:[%s276 + $0x8] sm:$0x3]
        %662 = vrot.lane.b32.xlu0 %v510, 34
        %v663 = vpop.permute.xlu0 %662
        %v664 = vrot.slane %v663, 6
        %vm665 = vcmask 277504
        %v666 = vsel %vm665, %v664, %v663
        %v669 = vmul.bf16 %v660, %v666
        %v670 = vmul.bf16 %v661, %v664
        %v673 = vcombine.low %v669, %v669
        %v675 = vunpack.c.l.s4 1983009808
        %v676 = vunpack.c.0.s8 %v675
        %v677 = vlaneseq
        %v678 = vshrl.u32 %v677, 7
        %v679 = vsub.s32 %v676, %v678
        %v680 = vrot.slane %v673, %v679
        %v682 = vunpack.c.l.s4 1983009808
        %v683 = vunpack.c.0.s8 %v682
        %v684 = vlaneseq
        %v685 = vshrl.u32 %v684, 7
        %v686 = vsub.s32 %v683, %v685
        %v687 = vrot.slane %v669, %v686
        %v688 = vcombine.low %v670, %v670
        %v690 = vunpack.c.l.s4 1983009808
        %v691 = vunpack.c.0.s8 %v690
        %v692 = vlaneseq
        %v693 = vshrl.u32 %v692, 7
        %v694 = vsub.s32 %v691, %v693
        %v695 = vrot.slane %v688, %v694
        %696 = vrot.lane.b32.xlu0 %v680, 94
        %v697 = vpop.permute.xlu0 %696
        %698 = vrot.lane.b32.xlu0 %v687, 94
        %v699 = vpop.permute.xlu0 %698
        %700 = vrot.lane.b32.xlu0 %v695, 94
        %v701 = vpop.permute.xlu0 %700
        %v702 = vrot.slane %v697, 4
        %v703 = vrot.slane %v699, 4
        %v704 = vrot.slane %v701, 4
        %v705 = vsel %vm450, %v702, %v703
        %vm706 = vcmask 769024
        %v707 = vsel %vm706, %v697, %v705
        %v708 = vsel %vm450, %v703, %v704
        %v709 = vsel %vm706, %v699, %v708
        %712 = vst [vmem:[#allocation2 + $0x20] sm:$0xcc] %v707
        %713 = vst [vmem:[#allocation2 + $0x28] sm:$0xcc] %v709
        %v714 = vld [vmem:[%s276] sm:$0xff]
        %v715 = vld [vmem:[%s276 + $0x8] sm:$0x3]
        %716 = vrot.lane.b32.xlu0 %v391, 64
        %v717 = vpop.permute.xlu0 %716
        %v718 = vrot.slane %v717, 6
        %vm719 = vcmask 523264
        %v720 = vsel %vm719, %v718, %v717
        %v723 = vmul.bf16 %v714, %v720
        %v724 = vmul.bf16 %v715, %v718
        %v727 = vcombine.high %v723, %v723
        %v729 = vunpack.c.l.s4 1983009808
        %v730 = vunpack.c.0.s8 %v729
        %v731 = vlaneseq
        %v732 = vshrl.u32 %v731, 7
        %v733 = vsub.s32 %v730, %v732
        %v734 = vrot.slane %v723, %v733
        %v736 = vunpack.c.l.s4 1983009808
        %v737 = vunpack.c.0.s8 %v736
        %v738 = vlaneseq
        %v739 = vshrl.u32 %v738, 7
        %v740 = vsub.s32 %v737, %v739
        %v741 = vrot.slane %v727, %v740
        %v743 = vunpack.c.l.s4 1983009808
        %v744 = vunpack.c.0.s8 %v743
        %v745 = vlaneseq
        %v746 = vshrl.u32 %v745, 7
        %v747 = vsub.s32 %v744, %v746
        %v748 = vrot.slane %v724, %v747
        %749 = vrot.lane.b32.xlu0 %v734, 64
        %v750 = vpop.permute.xlu0 %749
        %751 = vrot.lane.b32.xlu0 %v741, 64
        %v752 = vpop.permute.xlu0 %751
        %753 = vrot.lane.b32.xlu0 %v748, 64
        %v754 = vpop.permute.xlu0 %753
        %v755 = vrot.slane %v750, 4
        %v756 = vrot.slane %v752, 4
        %v757 = vrot.slane %v754, 4
        %v758 = vsel %vm450, %v755, %v756
        %v759 = vsel %vm719, %v750, %v758
        %v760 = vsel %vm450, %v756, %v757
        %v761 = vsel %vm719, %v752, %v760
        %764 = vst [vmem:[#allocation2 + $0x30] sm:$0x33] %v759
        %765 = vst [vmem:[#allocation2 + $0x38] sm:$0x33] %v761
        %v766 = vld [vmem:[%s276] sm:$0xff]
        %v767 = vld [vmem:[%s276 + $0x8] sm:$0x3]
        %v770 = vcombine.low %v766, %v766
        %v772 = vunpack.c.l.s4 1983009808
        %v773 = vunpack.c.0.s8 %v772
        %v774 = vlaneseq
        %v775 = vshrl.u32 %v774, 7
        %v776 = vsub.s32 %v773, %v775
        %v777 = vrot.slane %v770, %v776
        %v779 = vunpack.c.l.s4 1983009808
        %v780 = vunpack.c.0.s8 %v779
        %v781 = vlaneseq
        %v782 = vshrl.u32 %v781, 7
        %v783 = vsub.s32 %v780, %v782
        %v784 = vrot.slane %v766, %v783
        %v785 = vcombine.low %v767, %v767
        %v787 = vunpack.c.l.s4 1983009808
        %v788 = vunpack.c.0.s8 %v787
        %v789 = vlaneseq
        %v790 = vshrl.u32 %v789, 7
        %v791 = vsub.s32 %v788, %v790
        %v792 = vrot.slane %v785, %v791
        %793 = vrot.lane.b32.xlu0 %v777, 63
        %v794 = vpop.permute.xlu0 %793
        %795 = vrot.lane.b32.xlu0 %v784, 63
        %v796 = vpop.permute.xlu0 %795
        %797 = vrot.lane.b32.xlu0 %v792, 63
        %v798 = vpop.permute.xlu0 %797
        %v799 = vrot.slane %v794, 4
        %v800 = vrot.slane %v796, 4
        %v801 = vrot.slane %v798, 4
        %v802 = vsel %vm450, %v799, %v800
        %vm803 = vcmask 515072
        %v804 = vsel %vm803, %v794, %v802
        %v805 = vsel %vm450, %v800, %v801
        %v806 = vsel %vm803, %v796, %v805
        %809 = vst [vmem:[#allocation2 + $0x30] sm:$0xcc] %v804
        %810 = vst [vmem:[#allocation2 + $0x38] sm:$0xcc] %v806
        %v811 = vld [vmem:[%s276] sm:$0xff]
        %v812 = vld [vmem:[%s276 + $0x8] sm:$0x3]
        %813 = vrot.lane.b32.xlu0 %v510, 66
        %v814 = vpop.permute.xlu0 %813
        %v815 = vrot.slane %v814, 6
        %vm816 = vcmask 539648
        %v817 = vsel %vm816, %v815, %v814
        %v820 = vmul.bf16 %v811, %v817
        %v821 = vmul.bf16 %v812, %v815
        %v824 = vcombine.high %v820, %v820
        %v826 = vunpack.c.l.s4 1983009808
        %v827 = vunpack.c.0.s8 %v826
        %v828 = vlaneseq
        %v829 = vshrl.u32 %v828, 7
        %v830 = vsub.s32 %v827, %v829
        %v831 = vrot.slane %v820, %v830
        %v833 = vunpack.c.l.s4 1983009808
        %v834 = vunpack.c.0.s8 %v833
        %v835 = vlaneseq
        %v836 = vshrl.u32 %v835, 7
        %v837 = vsub.s32 %v834, %v836
        %v838 = vrot.slane %v824, %v837
        %v840 = vunpack.c.l.s4 1983009808
        %v841 = vunpack.c.0.s8 %v840
        %v842 = vlaneseq
        %v843 = vshrl.u32 %v842, 7
        %v844 = vsub.s32 %v841, %v843
        %v845 = vrot.slane %v821, %v844
        %846 = vrot.lane.b32.xlu0 %v831, 62
        %v847 = vpop.permute.xlu0 %846
        %848 = vrot.lane.b32.xlu0 %v838, 62
        %v849 = vpop.permute.xlu0 %848
        %850 = vrot.lane.b32.xlu0 %v845, 62
        %v851 = vpop.permute.xlu0 %850
        %v852 = vrot.slane %v847, 4
        %v853 = vrot.slane %v849, 4
        %v854 = vrot.slane %v851, 4
        %v855 = vsel %vm450, %v852, %v853
        %vm856 = vcmask 506880
        %v857 = vsel %vm856, %v847, %v855
        %v858 = vsel %vm450, %v853, %v854
        %v859 = vsel %vm856, %v849, %v858
        %862 = vst [vmem:[#allocation2 + $0x40] sm:$0x33] %v857
        %863 = vst [vmem:[#allocation2 + $0x48] sm:$0x33] %v859
        %v864 = vld [vmem:[%s1] sm:$0xf]
        %v865 = vld [vmem:[#allocation2] sm:$0xff]
        %v866 = vld [vmem:[#allocation2 + $0x8] sm:$0xff]
        %v867 = vld [vmem:[#allocation2 + $0x10] sm:$0xff]
        %v868 = vld [vmem:[#allocation2 + $0x18] sm:$0xff]
        %v869 = vld [vmem:[#allocation2 + $0x20] sm:$0xff]
        %v870 = vld [vmem:[#allocation2 + $0x28] sm:$0xff]
        %v871 = vld [vmem:[#allocation2 + $0x30] sm:$0xff]
        %v872 = vld [vmem:[#allocation2 + $0x38] sm:$0xff]
        %v873 = vld [vmem:[#allocation2 + $0x40] sm:$0x33]
        %v874 = vld [vmem:[#allocation2 + $0x48] sm:$0x33]
        %v875 = vld [vmem:[%s2] sm:$0xff]
        %877 = vset.pattern.permute.xlu0 0
        %878 = vperm.xlu0 %877, %v875
        %v879 = vpop.permute.xlu0 %878
        %v891 = vunpack.c.l.b16 %v865
        %v892 = vunpack.c.h.b16 %v865
        %v893 = vunpack.c.l.b16 %v866
        %v894 = vunpack.c.h.b16 %v866
        %v895 = vunpack.c.l.b16 %v867
        %v896 = vunpack.c.h.b16 %v867
        %v897 = vunpack.c.l.b16 %v868
        %v898 = vunpack.c.h.b16 %v868
        %v899 = vunpack.c.l.b16 %v869
        %v900 = vunpack.c.h.b16 %v869
        %v901 = vunpack.c.l.b16 %v870
        %v902 = vunpack.c.h.b16 %v870
        %v903 = vunpack.c.l.b16 %v871
        %v904 = vunpack.c.h.b16 %v871
        %v905 = vunpack.c.l.b16 %v872
        %v906 = vunpack.c.h.b16 %v872
        %v907 = vunpack.c.l.b16 %v873
        %v908 = vunpack.c.h.b16 %v873
        %v909 = vunpack.c.l.b16 %v874
        %v910 = vunpack.c.h.b16 %v874
        %v911 = vpack.c.b16 %v895, %v891
        %v912 = vpack.c.b16 %v896, %v892
        %v913 = vpack.c.b16 %v897, %v893
        %v914 = vpack.c.b16 %v898, %v894
        %v915 = vpack.c.b16 %v903, %v899
        %v916 = vpack.c.b16 %v904, %v900
        %v917 = vpack.c.b16 %v905, %v901
        %v918 = vpack.c.b16 %v906, %v902
        %v919 = vpack.c.b16 %v907, %v907
        %v920 = vpack.c.b16 %v908, %v908
        %v921 = vpack.c.b16 %v909, %v909
        %v922 = vpack.c.b16 %v910, %v910
        %vm931 = vcmask 293888
        %v933 = vsel %vm931, %v864, 0
        %vm935 = vcmask 1041408
        %v937 = vsel %vm935, %v919, 0
        %v940 = vsel %vm935, %v920, 0
        %v943 = vsel %vm935, %v921, 0
        %v946 = vsel %vm935, %v922, 0
        %948 = vmatprep.subr.bf16.mxu0 0
        %949 = vmatpush1.bf16.msra.mxu0 0
        %950 = vmatprep.subr.bf16.mxu0 0
        %951 = vmatpush1.bf16.msra.mxu0 0
        %952 = vmatprep.subr.bf16.mxu0 0
        %953 = vmatpush1.bf16.msra.mxu0 0
        %954 = vmatprep.subr.bf16.mxu0 0
        %955 = vmatpush1.bf16.msra.mxu0 0
        %956 = vmatprep.subr.bf16.mxu0 0
        %957 = vmatpush1.bf16.msra.mxu0 0
        %958 = vmatprep.subr.bf16.mxu0 %v940
        %959 = vmatpush1.bf16.msra.mxu0 %v937
        %960 = vmatprep.subr.bf16.mxu0 %v916
        %961 = vmatpush1.bf16.msra.mxu0 %v915
        %962 = vmatprep.subr.bf16.mxu0 %v912
        %963 = vmatpush1.bf16.msra.mxu0 %v911
        %964 = vmatprep.subr.bf16.mxu0 0
        %965 = vmatpush2.bf16.msra.mxu0 0
        %966 = vmatprep.subr.bf16.mxu0 0
        %967 = vmatpush2.bf16.msra.mxu0 0
        %968 = vmatprep.subr.bf16.mxu0 0
        %969 = vmatpush2.bf16.msra.mxu0 0
        %970 = vmatprep.subr.bf16.mxu0 0
        %971 = vmatpush2.bf16.msra.mxu0 0
        %972 = vmatprep.subr.bf16.mxu0 0
        %973 = vmatpush2.bf16.msra.mxu0 0
        %974 = vmatprep.subr.bf16.mxu0 0
        %975 = vmatpush2.bf16.msra.mxu0 0
        %976 = vmatprep.subr.bf16.mxu0 0
        %977 = vmatpush2.bf16.msra.mxu0 0
        %978 = vmatprep.subr.bf16.mxu0 0
        %979 = vmatpush2.bf16.msra.mxu0 0
        %980 = vmatprep.mubr.bf16.mxu0 0
        %981 = vmatmul.mubr.bf16.gmra.mxu0 %v933
        %v982 = vpop.f32.mrf.mxu0
        %v983 = vadd.f32 %v879, %v982
        %v984 = vpop.f32.mrf.mxu0
        %v985 = vadd.f32 %v879, %v984
        %v986 = vpop.f32.mrf.mxu0
        %v987 = vpop.f32.mrf.mxu0
        %988 = vdwg.mxu0
        %989 = vmatprep.subr.bf16.mxu0 0
        %990 = vmatpush1.bf16.msra.mxu0 0
        %991 = vmatprep.subr.bf16.mxu0 0
        %992 = vmatpush1.bf16.msra.mxu0 0
        %993 = vmatprep.subr.bf16.mxu0 0
        %994 = vmatpush1.bf16.msra.mxu0 0
        %995 = vmatprep.subr.bf16.mxu0 0
        %996 = vmatpush1.bf16.msra.mxu0 0
        %997 = vmatprep.subr.bf16.mxu0 0
        %998 = vmatpush1.bf16.msra.mxu0 0
        %999 = vmatprep.subr.bf16.mxu0 %v946
        %1000 = vmatpush1.bf16.msra.mxu0 %v943
        %1001 = vmatprep.subr.bf16.mxu0 %v918
        %1002 = vmatpush1.bf16.msra.mxu0 %v917
        %1003 = vmatprep.subr.bf16.mxu0 %v914
        %1004 = vmatpush1.bf16.msra.mxu0 %v913
        %1005 = vmatprep.subr.bf16.mxu0 0
        %1006 = vmatpush2.bf16.msra.mxu0 0
        %1007 = vmatprep.subr.bf16.mxu0 0
        %1008 = vmatpush2.bf16.msra.mxu0 0
        %1009 = vmatprep.subr.bf16.mxu0 0
        %1010 = vmatpush2.bf16.msra.mxu0 0
        %1011 = vmatprep.subr.bf16.mxu0 0
        %1012 = vmatpush2.bf16.msra.mxu0 0
        %1013 = vmatprep.subr.bf16.mxu0 0
        %1014 = vmatpush2.bf16.msra.mxu0 0
        %1015 = vmatprep.subr.bf16.mxu0 0
        %1016 = vmatpush2.bf16.msra.mxu0 0
        %1017 = vmatprep.subr.bf16.mxu0 0
        %1018 = vmatpush2.bf16.msra.mxu0 0
        %1019 = vmatprep.subr.bf16.mxu0 0
        %1020 = vmatpush2.bf16.msra.mxu0 0
        %1021 = vmatprep.mubr.bf16.mxu0 0
        %1022 = vmatmul.mubr.bf16.gmra.mxu0 %v933
        %v1023 = vpop.f32.mrf.mxu0
        %v1024 = vadd.f32 %v879, %v1023
        %v1025 = vpop.f32.mrf.mxu0
        %v1026 = vadd.f32 %v879, %v1025
        %v1027 = vpop.f32.mrf.mxu0
        %v1028 = vpop.f32.mrf.mxu0
        %1029 = vdwg.mxu0
        %v1030 = vmax.f32 %v983, 0.0
        %v1031 = vmax.f32 %v985, 0.0
        %v1032 = vmax.f32 %v1024, 0.0
        %v1033 = vmax.f32 %v1026, 0.0
        %1034 = vst [vmem:[%s306] sm:$0xff] %v1030
        %1035 = vst [vmem:[%s306 + $0x8] sm:$0xff] %v1031
        %1036 = vst [vmem:[%s306 + $0x10] sm:$0xff] %v1032
        %1037 = vst [vmem:[%s306 + $0x18] sm:$0xff] %v1033
        %1039 = vrot.lane.b32.xlu0 %v1030, 96
        %v1040 = vpop.permute.xlu0 %1039
        %v1042 = vmax.f32 %v1030, %v1040
        %v1043 = vld [vmem:[#allocation6] sm:$0xff]
        %v1044 = vld [vmem:[#allocation6 + $0x8] sm:$0xff]
        %v1045 = vld [vmem:[#allocation6 + $0x10] sm:$0xff]
        %v1046 = vld [vmem:[#allocation6 + $0x18] sm:$0xff]
        %vm1047 = vcmask 261120
        %v1049 = vsel %vm1047, %v1042, 0
        %1051 = vmatprep.subr.mxu0 0.0
        %1052 = vmatpush1.msra.mxu0 0.0
        %1053 = vmatprep.subr.mxu0 0.0
        %1054 = vmatpush1.msra.mxu0 0.0
        %1055 = vmatprep.subr.mxu0 0.0
        %1056 = vmatpush1.msra.mxu0 0.0
        %1057 = vmatprep.subr.mxu0 0.0
        %1058 = vmatpush1.msra.mxu0 0.0
        %1059 = vmatprep.subr.mxu0 0.0
        %1060 = vmatpush1.msra.mxu0 0.0
        %1061 = vmatprep.subr.mxu0 0.0
        %1062 = vmatpush1.msra.mxu0 0.0
        %1063 = vmatprep.subr.mxu0 0.0
        %1064 = vmatpush1.msra.mxu0 0.0
        %1065 = vmatprep.subr.mxu0 0.0
        %1066 = vmatpush1.msra.mxu0 0.0
        %1067 = vmatprep.subr.mxu0 0.0
        %1068 = vmatpush1.msra.mxu0 0.0
        %1069 = vmatprep.subr.mxu0 0.0
        %1070 = vmatpush1.msra.mxu0 0.0
        %1071 = vmatprep.subr.mxu0 0.0
        %1072 = vmatpush1.msra.mxu0 0.0
        %1073 = vmatprep.subr.mxu0 0.0
        %1074 = vmatpush1.msra.mxu0 0.0
        %1075 = vmatprep.subr.mxu0 0.0
        %1076 = vmatpush1.msra.mxu0 %v1046
        %1077 = vmatprep.subr.mxu0 0.0
        %1078 = vmatpush1.msra.mxu0 %v1045
        %1079 = vmatprep.subr.mxu0 0.0
        %1080 = vmatpush1.msra.mxu0 %v1044
        %1081 = vmatprep.subr.mxu0 0.0
        %1082 = vmatpush1.msra.mxu0 %v1043
        %1083 = vmatprep.subr.mxu0 0.0
        %1084 = vmatpush2.msra.mxu0 0.0
        %1085 = vmatprep.subr.mxu0 0.0
        %1086 = vmatpush2.msra.mxu0 0.0
        %1087 = vmatprep.subr.mxu0 0.0
        %1088 = vmatpush2.msra.mxu0 0.0
        %1089 = vmatprep.subr.mxu0 0.0
        %1090 = vmatpush2.msra.mxu0 0.0
        %1091 = vmatprep.subr.mxu0 0.0
        %1092 = vmatpush2.msra.mxu0 0.0
        %1093 = vmatprep.subr.mxu0 0.0
        %1094 = vmatpush2.msra.mxu0 0.0
        %1095 = vmatprep.subr.mxu0 0.0
        %1096 = vmatpush2.msra.mxu0 0.0
        %1097 = vmatprep.subr.mxu0 0.0
        %1098 = vmatpush2.msra.mxu0 0.0
        %1099 = vmatprep.subr.mxu0 0.0
        %1100 = vmatpush2.msra.mxu0 0.0
        %1101 = vmatprep.subr.mxu0 0.0
        %1102 = vmatpush2.msra.mxu0 0.0
        %1103 = vmatprep.subr.mxu0 0.0
        %1104 = vmatpush2.msra.mxu0 0.0
        %1105 = vmatprep.subr.mxu0 0.0
        %1106 = vmatpush2.msra.mxu0 0.0
        %1107 = vmatprep.subr.mxu0 0.0
        %1108 = vmatpush2.msra.mxu0 0.0
        %1109 = vmatprep.subr.mxu0 0.0
        %1110 = vmatpush2.msra.mxu0 0.0
        %1111 = vmatprep.subr.mxu0 0.0
        %1112 = vmatpush2.msra.mxu0 0.0
        %1113 = vmatprep.subr.mxu0 0.0
        %1114 = vmatpush2.msra.mxu0 0.0
        %1115 = vmatprep.mubr.f32.mxu0 0.0
        %1116 = vmatmul.mubr.f32.gmra.mxu0 %v1049
        %v1117 = vpop.f32.mrf.mxu0
        %v1118 = vadd.f32 0.0, %v1117
        %v1119 = vpop.f32.mrf.mxu0
        %1120 = vdwg.mxu0
        %1122 = vrot.lane.b32.xlu0 %v1118, 112
        %v1123 = vpop.permute.xlu0 %1122
        %v1125 = vmax.f32 %v1118, %v1123
        %vm1126 = vcmask 130048
        %1127 = vst.msk [vmem:[%s313] sm:$0xff] %vm1126, %v1125
        %v1128 = vld [vmem:[#allocation6] sm:$0xff]
        %v1129 = vld [vmem:[#allocation6 + $0x8] sm:$0xff]
        %v1130 = vld [vmem:[#allocation6 + $0x10] sm:$0xff]
        %v1131 = vld [vmem:[#allocation6 + $0x18] sm:$0xff]
        %1132 = vrot.lane.b32.xlu0 %v1042, 64
        %v1133 = vpop.permute.xlu0 %1132
        %v1134 = vsel %vm1047, %v1133, 0
        %1136 = vmatprep.subr.mxu0 0.0
        %1137 = vmatpush1.msra.mxu0 0.0
        %1138 = vmatprep.subr.mxu0 0.0
        %1139 = vmatpush1.msra.mxu0 0.0
        %1140 = vmatprep.subr.mxu0 0.0
        %1141 = vmatpush1.msra.mxu0 0.0
        %1142 = vmatprep.subr.mxu0 0.0
        %1143 = vmatpush1.msra.mxu0 0.0
        %1144 = vmatprep.subr.mxu0 0.0
        %1145 = vmatpush1.msra.mxu0 0.0
        %1146 = vmatprep.subr.mxu0 0.0
        %1147 = vmatpush1.msra.mxu0 0.0
        %1148 = vmatprep.subr.mxu0 0.0
        %1149 = vmatpush1.msra.mxu0 0.0
        %1150 = vmatprep.subr.mxu0 0.0
        %1151 = vmatpush1.msra.mxu0 0.0
        %1152 = vmatprep.subr.mxu0 0.0
        %1153 = vmatpush1.msra.mxu0 0.0
        %1154 = vmatprep.subr.mxu0 0.0
        %1155 = vmatpush1.msra.mxu0 0.0
        %1156 = vmatprep.subr.mxu0 0.0
        %1157 = vmatpush1.msra.mxu0 0.0
        %1158 = vmatprep.subr.mxu0 0.0
        %1159 = vmatpush1.msra.mxu0 0.0
        %1160 = vmatprep.subr.mxu0 0.0
        %1161 = vmatpush1.msra.mxu0 %v1131
        %1162 = vmatprep.subr.mxu0 0.0
        %1163 = vmatpush1.msra.mxu0 %v1130
        %1164 = vmatprep.subr.mxu0 0.0
        %1165 = vmatpush1.msra.mxu0 %v1129
        %1166 = vmatprep.subr.mxu0 0.0
        %1167 = vmatpush1.msra.mxu0 %v1128
        %1168 = vmatprep.subr.mxu0 0.0
        %1169 = vmatpush2.msra.mxu0 0.0
        %1170 = vmatprep.subr.mxu0 0.0
        %1171 = vmatpush2.msra.mxu0 0.0
        %1172 = vmatprep.subr.mxu0 0.0
        %1173 = vmatpush2.msra.mxu0 0.0
        %1174 = vmatprep.subr.mxu0 0.0
        %1175 = vmatpush2.msra.mxu0 0.0
        %1176 = vmatprep.subr.mxu0 0.0
        %1177 = vmatpush2.msra.mxu0 0.0
        %1178 = vmatprep.subr.mxu0 0.0
        %1179 = vmatpush2.msra.mxu0 0.0
        %1180 = vmatprep.subr.mxu0 0.0
        %1181 = vmatpush2.msra.mxu0 0.0
        %1182 = vmatprep.subr.mxu0 0.0
        %1183 = vmatpush2.msra.mxu0 0.0
        %1184 = vmatprep.subr.mxu0 0.0
        %1185 = vmatpush2.msra.mxu0 0.0
        %1186 = vmatprep.subr.mxu0 0.0
        %1187 = vmatpush2.msra.mxu0 0.0
        %1188 = vmatprep.subr.mxu0 0.0
        %1189 = vmatpush2.msra.mxu0 0.0
        %1190 = vmatprep.subr.mxu0 0.0
        %1191 = vmatpush2.msra.mxu0 0.0
        %1192 = vmatprep.subr.mxu0 0.0
        %1193 = vmatpush2.msra.mxu0 0.0
        %1194 = vmatprep.subr.mxu0 0.0
        %1195 = vmatpush2.msra.mxu0 0.0
        %1196 = vmatprep.subr.mxu0 0.0
        %1197 = vmatpush2.msra.mxu0 0.0
        %1198 = vmatprep.subr.mxu0 0.0
        %1199 = vmatpush2.msra.mxu0 0.0
        %1200 = vmatprep.mubr.f32.mxu0 0.0
        %1201 = vmatmul.mubr.f32.gmra.mxu0 %v1134
        %v1202 = vpop.f32.mrf.mxu0
        %v1203 = vadd.f32 0.0, %v1202
        %v1204 = vpop.f32.mrf.mxu0
        %1205 = vdwg.mxu0
        %1207 = vrot.lane.b32.xlu0 %v1203, 112
        %v1208 = vpop.permute.xlu0 %1207
        %v1210 = vmax.f32 %v1203, %v1208
        %1212 = vrot.lane.b32.xlu0 %v1210, 16
        %v1213 = vpop.permute.xlu0 %1212
        %vm1215 = vcmask 261248
        %1216 = vst.msk [vmem:[%s313] sm:$0xff] %vm1215, %v1213
        %1218 = vrot.lane.b32.xlu0 %v1031, 96
        %v1219 = vpop.permute.xlu0 %1218
        %v1221 = vmax.f32 %v1031, %v1219
        %v1222 = vld [vmem:[#allocation6] sm:$0xff]
        %v1223 = vld [vmem:[#allocation6 + $0x8] sm:$0xff]
        %v1224 = vld [vmem:[#allocation6 + $0x10] sm:$0xff]
        %v1225 = vld [vmem:[#allocation6 + $0x18] sm:$0xff]
        %v1227 = vsel %vm1047, %v1221, 0
        %1229 = vmatprep.subr.mxu0 0.0
        %1230 = vmatpush1.msra.mxu0 0.0
        %1231 = vmatprep.subr.mxu0 0.0
        %1232 = vmatpush1.msra.mxu0 0.0
        %1233 = vmatprep.subr.mxu0 0.0
        %1234 = vmatpush1.msra.mxu0 0.0
        %1235 = vmatprep.subr.mxu0 0.0
        %1236 = vmatpush1.msra.mxu0 0.0
        %1237 = vmatprep.subr.mxu0 0.0
        %1238 = vmatpush1.msra.mxu0 0.0
        %1239 = vmatprep.subr.mxu0 0.0
        %1240 = vmatpush1.msra.mxu0 0.0
        %1241 = vmatprep.subr.mxu0 0.0
        %1242 = vmatpush1.msra.mxu0 0.0
        %1243 = vmatprep.subr.mxu0 0.0
        %1244 = vmatpush1.msra.mxu0 0.0
        %1245 = vmatprep.subr.mxu0 0.0
        %1246 = vmatpush1.msra.mxu0 0.0
        %1247 = vmatprep.subr.mxu0 0.0
        %1248 = vmatpush1.msra.mxu0 0.0
        %1249 = vmatprep.subr.mxu0 0.0
        %1250 = vmatpush1.msra.mxu0 0.0
        %1251 = vmatprep.subr.mxu0 0.0
        %1252 = vmatpush1.msra.mxu0 0.0
        %1253 = vmatprep.subr.mxu0 0.0
        %1254 = vmatpush1.msra.mxu0 %v1225
        %1255 = vmatprep.subr.mxu0 0.0
        %1256 = vmatpush1.msra.mxu0 %v1224
        %1257 = vmatprep.subr.mxu0 0.0
        %1258 = vmatpush1.msra.mxu0 %v1223
        %1259 = vmatprep.subr.mxu0 0.0
        %1260 = vmatpush1.msra.mxu0 %v1222
        %1261 = vmatprep.subr.mxu0 0.0
        %1262 = vmatpush2.msra.mxu0 0.0
        %1263 = vmatprep.subr.mxu0 0.0
        %1264 = vmatpush2.msra.mxu0 0.0
        %1265 = vmatprep.subr.mxu0 0.0
        %1266 = vmatpush2.msra.mxu0 0.0
        %1267 = vmatprep.subr.mxu0 0.0
        %1268 = vmatpush2.msra.mxu0 0.0
        %1269 = vmatprep.subr.mxu0 0.0
        %1270 = vmatpush2.msra.mxu0 0.0
        %1271 = vmatprep.subr.mxu0 0.0
        %1272 = vmatpush2.msra.mxu0 0.0
        %1273 = vmatprep.subr.mxu0 0.0
        %1274 = vmatpush2.msra.mxu0 0.0
        %1275 = vmatprep.subr.mxu0 0.0
        %1276 = vmatpush2.msra.mxu0 0.0
        %1277 = vmatprep.subr.mxu0 0.0
        %1278 = vmatpush2.msra.mxu0 0.0
        %1279 = vmatprep.subr.mxu0 0.0
        %1280 = vmatpush2.msra.mxu0 0.0
        %1281 = vmatprep.subr.mxu0 0.0
        %1282 = vmatpush2.msra.mxu0 0.0
        %1283 = vmatprep.subr.mxu0 0.0
        %1284 = vmatpush2.msra.mxu0 0.0
        %1285 = vmatprep.subr.mxu0 0.0
        %1286 = vmatpush2.msra.mxu0 0.0
        %1287 = vmatprep.subr.mxu0 0.0
        %1288 = vmatpush2.msra.mxu0 0.0
        %1289 = vmatprep.subr.mxu0 0.0
        %1290 = vmatpush2.msra.mxu0 0.0
        %1291 = vmatprep.subr.mxu0 0.0
        %1292 = vmatpush2.msra.mxu0 0.0
        %1293 = vmatprep.mubr.f32.mxu0 0.0
        %1294 = vmatmul.mubr.f32.gmra.mxu0 %v1227
        %v1295 = vpop.f32.mrf.mxu0
        %v1296 = vadd.f32 0.0, %v1295
        %v1297 = vpop.f32.mrf.mxu0
        %1298 = vdwg.mxu0
        %1300 = vrot.lane.b32.xlu0 %v1296, 112
        %v1301 = vpop.permute.xlu0 %1300
        %v1303 = vmax.f32 %v1296, %v1301
        %1305 = vrot.lane.b32.xlu0 %v1303, 32
        %v1306 = vpop.permute.xlu0 %1305
        %vm1308 = vcmask 392448
        %1309 = vst.msk [vmem:[%s313] sm:$0xff] %vm1308, %v1306
        %v1310 = vld [vmem:[#allocation6] sm:$0xff]
        %v1311 = vld [vmem:[#allocation6 + $0x8] sm:$0xff]
        %v1312 = vld [vmem:[#allocation6 + $0x10] sm:$0xff]
        %v1313 = vld [vmem:[#allocation6 + $0x18] sm:$0xff]
        %1314 = vrot.lane.b32.xlu0 %v1221, 64
        %v1315 = vpop.permute.xlu0 %1314
        %v1316 = vsel %vm1047, %v1315, 0
        %1318 = vmatprep.subr.mxu0 0.0
        %1319 = vmatpush1.msra.mxu0 0.0
        %1320 = vmatprep.subr.mxu0 0.0
        %1321 = vmatpush1.msra.mxu0 0.0
        %1322 = vmatprep.subr.mxu0 0.0
        %1323 = vmatpush1.msra.mxu0 0.0
        %1324 = vmatprep.subr.mxu0 0.0
        %1325 = vmatpush1.msra.mxu0 0.0
        %1326 = vmatprep.subr.mxu0 0.0
        %1327 = vmatpush1.msra.mxu0 0.0
        %1328 = vmatprep.subr.mxu0 0.0
        %1329 = vmatpush1.msra.mxu0 0.0
        %1330 = vmatprep.subr.mxu0 0.0
        %1331 = vmatpush1.msra.mxu0 0.0
        %1332 = vmatprep.subr.mxu0 0.0
        %1333 = vmatpush1.msra.mxu0 0.0
        %1334 = vmatprep.subr.mxu0 0.0
        %1335 = vmatpush1.msra.mxu0 0.0
        %1336 = vmatprep.subr.mxu0 0.0
        %1337 = vmatpush1.msra.mxu0 0.0
        %1338 = vmatprep.subr.mxu0 0.0
        %1339 = vmatpush1.msra.mxu0 0.0
        %1340 = vmatprep.subr.mxu0 0.0
        %1341 = vmatpush1.msra.mxu0 0.0
        %1342 = vmatprep.subr.mxu0 0.0
        %1343 = vmatpush1.msra.mxu0 %v1313
        %1344 = vmatprep.subr.mxu0 0.0
        %1345 = vmatpush1.msra.mxu0 %v1312
        %1346 = vmatprep.subr.mxu0 0.0
        %1347 = vmatpush1.msra.mxu0 %v1311
        %1348 = vmatprep.subr.mxu0 0.0
        %1349 = vmatpush1.msra.mxu0 %v1310
        %1350 = vmatprep.subr.mxu0 0.0
        %1351 = vmatpush2.msra.mxu0 0.0
        %1352 = vmatprep.subr.mxu0 0.0
        %1353 = vmatpush2.msra.mxu0 0.0
        %1354 = vmatprep.subr.mxu0 0.0
        %1355 = vmatpush2.msra.mxu0 0.0
        %1356 = vmatprep.subr.mxu0 0.0
        %1357 = vmatpush2.msra.mxu0 0.0
        %1358 = vmatprep.subr.mxu0 0.0
        %1359 = vmatpush2.msra.mxu0 0.0
        %1360 = vmatprep.subr.mxu0 0.0
        %1361 = vmatpush2.msra.mxu0 0.0
        %1362 = vmatprep.subr.mxu0 0.0
        %1363 = vmatpush2.msra.mxu0 0.0
        %1364 = vmatprep.subr.mxu0 0.0
        %1365 = vmatpush2.msra.mxu0 0.0
        %1366 = vmatprep.subr.mxu0 0.0
        %1367 = vmatpush2.msra.mxu0 0.0
        %1368 = vmatprep.subr.mxu0 0.0
        %1369 = vmatpush2.msra.mxu0 0.0
        %1370 = vmatprep.subr.mxu0 0.0
        %1371 = vmatpush2.msra.mxu0 0.0
        %1372 = vmatprep.subr.mxu0 0.0
        %1373 = vmatpush2.msra.mxu0 0.0
        %1374 = vmatprep.subr.mxu0 0.0
        %1375 = vmatpush2.msra.mxu0 0.0
        %1376 = vmatprep.subr.mxu0 0.0
        %1377 = vmatpush2.msra.mxu0 0.0
        %1378 = vmatprep.subr.mxu0 0.0
        %1379 = vmatpush2.msra.mxu0 0.0
        %1380 = vmatprep.subr.mxu0 0.0
        %1381 = vmatpush2.msra.mxu0 0.0
        %1382 = vmatprep.mubr.f32.mxu0 0.0
        %1383 = vmatmul.mubr.f32.gmra.mxu0 %v1316
        %v1384 = vpop.f32.mrf.mxu0
        %v1385 = vadd.f32 0.0, %v1384
        %v1386 = vpop.f32.mrf.mxu0
        %1387 = vdwg.mxu0
        %1389 = vrot.lane.b32.xlu0 %v1385, 112
        %v1390 = vpop.permute.xlu0 %1389
        %v1392 = vmax.f32 %v1385, %v1390
        %1394 = vrot.lane.b32.xlu0 %v1392, 48
        %v1395 = vpop.permute.xlu0 %1394
        %vm1397 = vcmask 523648
        %1398 = vst.msk [vmem:[%s313] sm:$0xff] %vm1397, %v1395
        %1400 = vrot.lane.b32.xlu0 %v1032, 96
        %v1401 = vpop.permute.xlu0 %1400
        %v1403 = vmax.f32 %v1032, %v1401
        %v1404 = vld [vmem:[#allocation6] sm:$0xff]
        %v1405 = vld [vmem:[#allocation6 + $0x8] sm:$0xff]
        %v1406 = vld [vmem:[#allocation6 + $0x10] sm:$0xff]
        %v1407 = vld [vmem:[#allocation6 + $0x18] sm:$0xff]
        %v1409 = vsel %vm1047, %v1403, 0
        %1411 = vmatprep.subr.mxu0 0.0
        %1412 = vmatpush1.msra.mxu0 0.0
        %1413 = vmatprep.subr.mxu0 0.0
        %1414 = vmatpush1.msra.mxu0 0.0
        %1415 = vmatprep.subr.mxu0 0.0
        %1416 = vmatpush1.msra.mxu0 0.0
        %1417 = vmatprep.subr.mxu0 0.0
        %1418 = vmatpush1.msra.mxu0 0.0
        %1419 = vmatprep.subr.mxu0 0.0
        %1420 = vmatpush1.msra.mxu0 0.0
        %1421 = vmatprep.subr.mxu0 0.0
        %1422 = vmatpush1.msra.mxu0 0.0
        %1423 = vmatprep.subr.mxu0 0.0
        %1424 = vmatpush1.msra.mxu0 0.0
        %1425 = vmatprep.subr.mxu0 0.0
        %1426 = vmatpush1.msra.mxu0 0.0
        %1427 = vmatprep.subr.mxu0 0.0
        %1428 = vmatpush1.msra.mxu0 0.0
        %1429 = vmatprep.subr.mxu0 0.0
        %1430 = vmatpush1.msra.mxu0 0.0
        %1431 = vmatprep.subr.mxu0 0.0
        %1432 = vmatpush1.msra.mxu0 0.0
        %1433 = vmatprep.subr.mxu0 0.0
        %1434 = vmatpush1.msra.mxu0 0.0
        %1435 = vmatprep.subr.mxu0 0.0
        %1436 = vmatpush1.msra.mxu0 %v1407
        %1437 = vmatprep.subr.mxu0 0.0
        %1438 = vmatpush1.msra.mxu0 %v1406
        %1439 = vmatprep.subr.mxu0 0.0
        %1440 = vmatpush1.msra.mxu0 %v1405
        %1441 = vmatprep.subr.mxu0 0.0
        %1442 = vmatpush1.msra.mxu0 %v1404
        %1443 = vmatprep.subr.mxu0 0.0
        %1444 = vmatpush2.msra.mxu0 0.0
        %1445 = vmatprep.subr.mxu0 0.0
        %1446 = vmatpush2.msra.mxu0 0.0
        %1447 = vmatprep.subr.mxu0 0.0
        %1448 = vmatpush2.msra.mxu0 0.0
        %1449 = vmatprep.subr.mxu0 0.0
        %1450 = vmatpush2.msra.mxu0 0.0
        %1451 = vmatprep.subr.mxu0 0.0
        %1452 = vmatpush2.msra.mxu0 0.0
        %1453 = vmatprep.subr.mxu0 0.0
        %1454 = vmatpush2.msra.mxu0 0.0
        %1455 = vmatprep.subr.mxu0 0.0
        %1456 = vmatpush2.msra.mxu0 0.0
        %1457 = vmatprep.subr.mxu0 0.0
        %1458 = vmatpush2.msra.mxu0 0.0
        %1459 = vmatprep.subr.mxu0 0.0
        %1460 = vmatpush2.msra.mxu0 0.0
        %1461 = vmatprep.subr.mxu0 0.0
        %1462 = vmatpush2.msra.mxu0 0.0
        %1463 = vmatprep.subr.mxu0 0.0
        %1464 = vmatpush2.msra.mxu0 0.0
        %1465 = vmatprep.subr.mxu0 0.0
        %1466 = vmatpush2.msra.mxu0 0.0
        %1467 = vmatprep.subr.mxu0 0.0
        %1468 = vmatpush2.msra.mxu0 0.0
        %1469 = vmatprep.subr.mxu0 0.0
        %1470 = vmatpush2.msra.mxu0 0.0
        %1471 = vmatprep.subr.mxu0 0.0
        %1472 = vmatpush2.msra.mxu0 0.0
        %1473 = vmatprep.subr.mxu0 0.0
        %1474 = vmatpush2.msra.mxu0 0.0
        %1475 = vmatprep.mubr.f32.mxu0 0.0
        %1476 = vmatmul.mubr.f32.gmra.mxu0 %v1409
        %v1477 = vpop.f32.mrf.mxu0
        %v1478 = vadd.f32 0.0, %v1477
        %v1479 = vpop.f32.mrf.mxu0
        %1480 = vdwg.mxu0
        %1482 = vrot.lane.b32.xlu0 %v1478, 112
        %v1483 = vpop.permute.xlu0 %1482
        %v1485 = vmax.f32 %v1478, %v1483
        %1487 = vrot.lane.b32.xlu0 %v1485, 64
        %v1488 = vpop.permute.xlu0 %1487
        %vm1490 = vcmask 654848
        %1491 = vst.msk [vmem:[%s313] sm:$0xff] %vm1490, %v1488
        %v1492 = vld [vmem:[#allocation6] sm:$0xff]
        %v1493 = vld [vmem:[#allocation6 + $0x8] sm:$0xff]
        %v1494 = vld [vmem:[#allocation6 + $0x10] sm:$0xff]
        %v1495 = vld [vmem:[#allocation6 + $0x18] sm:$0xff]
        %1496 = vrot.lane.b32.xlu0 %v1403, 64
        %v1497 = vpop.permute.xlu0 %1496
        %v1498 = vsel %vm1047, %v1497, 0
        %1500 = vmatprep.subr.mxu0 0.0
        %1501 = vmatpush1.msra.mxu0 0.0
        %1502 = vmatprep.subr.mxu0 0.0
        %1503 = vmatpush1.msra.mxu0 0.0
        %1504 = vmatprep.subr.mxu0 0.0
        %1505 = vmatpush1.msra.mxu0 0.0
        %1506 = vmatprep.subr.mxu0 0.0
        %1507 = vmatpush1.msra.mxu0 0.0
        %1508 = vmatprep.subr.mxu0 0.0
        %1509 = vmatpush1.msra.mxu0 0.0
        %1510 = vmatprep.subr.mxu0 0.0
        %1511 = vmatpush1.msra.mxu0 0.0
        %1512 = vmatprep.subr.mxu0 0.0
        %1513 = vmatpush1.msra.mxu0 0.0
        %1514 = vmatprep.subr.mxu0 0.0
        %1515 = vmatpush1.msra.mxu0 0.0
        %1516 = vmatprep.subr.mxu0 0.0
        %1517 = vmatpush1.msra.mxu0 0.0
        %1518 = vmatprep.subr.mxu0 0.0
        %1519 = vmatpush1.msra.mxu0 0.0
        %1520 = vmatprep.subr.mxu0 0.0
        %1521 = vmatpush1.msra.mxu0 0.0
        %1522 = vmatprep.subr.mxu0 0.0
        %1523 = vmatpush1.msra.mxu0 0.0
        %1524 = vmatprep.subr.mxu0 0.0
        %1525 = vmatpush1.msra.mxu0 %v1495
        %1526 = vmatprep.subr.mxu0 0.0
        %1527 = vmatpush1.msra.mxu0 %v1494
        %1528 = vmatprep.subr.mxu0 0.0
        %1529 = vmatpush1.msra.mxu0 %v1493
        %1530 = vmatprep.subr.mxu0 0.0
        %1531 = vmatpush1.msra.mxu0 %v1492
        %1532 = vmatprep.subr.mxu0 0.0
        %1533 = vmatpush2.msra.mxu0 0.0
        %1534 = vmatprep.subr.mxu0 0.0
        %1535 = vmatpush2.msra.mxu0 0.0
        %1536 = vmatprep.subr.mxu0 0.0
        %1537 = vmatpush2.msra.mxu0 0.0
        %1538 = vmatprep.subr.mxu0 0.0
        %1539 = vmatpush2.msra.mxu0 0.0
        %1540 = vmatprep.subr.mxu0 0.0
        %1541 = vmatpush2.msra.mxu0 0.0
        %1542 = vmatprep.subr.mxu0 0.0
        %1543 = vmatpush2.msra.mxu0 0.0
        %1544 = vmatprep.subr.mxu0 0.0
        %1545 = vmatpush2.msra.mxu0 0.0
        %1546 = vmatprep.subr.mxu0 0.0
        %1547 = vmatpush2.msra.mxu0 0.0
        %1548 = vmatprep.subr.mxu0 0.0
        %1549 = vmatpush2.msra.mxu0 0.0
        %1550 = vmatprep.subr.mxu0 0.0
        %1551 = vmatpush2.msra.mxu0 0.0
        %1552 = vmatprep.subr.mxu0 0.0
        %1553 = vmatpush2.msra.mxu0 0.0
        %1554 = vmatprep.subr.mxu0 0.0
        %1555 = vmatpush2.msra.mxu0 0.0
        %1556 = vmatprep.subr.mxu0 0.0
        %1557 = vmatpush2.msra.mxu0 0.0
        %1558 = vmatprep.subr.mxu0 0.0
        %1559 = vmatpush2.msra.mxu0 0.0
        %1560 = vmatprep.subr.mxu0 0.0
        %1561 = vmatpush2.msra.mxu0 0.0
        %1562 = vmatprep.subr.mxu0 0.0
        %1563 = vmatpush2.msra.mxu0 0.0
        %1564 = vmatprep.mubr.f32.mxu0 0.0
        %1565 = vmatmul.mubr.f32.gmra.mxu0 %v1498
        %v1566 = vpop.f32.mrf.mxu0
        %v1567 = vadd.f32 0.0, %v1566
        %v1568 = vpop.f32.mrf.mxu0
        %1569 = vdwg.mxu0
        %1571 = vrot.lane.b32.xlu0 %v1567, 112
        %v1572 = vpop.permute.xlu0 %1571
        %v1574 = vmax.f32 %v1567, %v1572
        %1576 = vrot.lane.b32.xlu0 %v1574, 80
        %v1577 = vpop.permute.xlu0 %1576
        %vm1579 = vcmask 786048
        %1580 = vst.msk [vmem:[%s313] sm:$0xff] %vm1579, %v1577
        %1582 = vrot.lane.b32.xlu0 %v1033, 96
        %v1583 = vpop.permute.xlu0 %1582
        %v1585 = vmax.f32 %v1033, %v1583
        %v1586 = vld [vmem:[#allocation6] sm:$0xff]
        %v1587 = vld [vmem:[#allocation6 + $0x8] sm:$0xff]
        %v1588 = vld [vmem:[#allocation6 + $0x10] sm:$0xff]
        %v1589 = vld [vmem:[#allocation6 + $0x18] sm:$0xff]
        %v1591 = vsel %vm1047, %v1585, 0
        %1593 = vmatprep.subr.mxu0 0.0
        %1594 = vmatpush1.msra.mxu0 0.0
        %1595 = vmatprep.subr.mxu0 0.0
        %1596 = vmatpush1.msra.mxu0 0.0
        %1597 = vmatprep.subr.mxu0 0.0
        %1598 = vmatpush1.msra.mxu0 0.0
        %1599 = vmatprep.subr.mxu0 0.0
        %1600 = vmatpush1.msra.mxu0 0.0
        %1601 = vmatprep.subr.mxu0 0.0
        %1602 = vmatpush1.msra.mxu0 0.0
        %1603 = vmatprep.subr.mxu0 0.0
        %1604 = vmatpush1.msra.mxu0 0.0
        %1605 = vmatprep.subr.mxu0 0.0
        %1606 = vmatpush1.msra.mxu0 0.0
        %1607 = vmatprep.subr.mxu0 0.0
        %1608 = vmatpush1.msra.mxu0 0.0
        %1609 = vmatprep.subr.mxu0 0.0
        %1610 = vmatpush1.msra.mxu0 0.0
        %1611 = vmatprep.subr.mxu0 0.0
        %1612 = vmatpush1.msra.mxu0 0.0
        %1613 = vmatprep.subr.mxu0 0.0
        %1614 = vmatpush1.msra.mxu0 0.0
        %1615 = vmatprep.subr.mxu0 0.0
        %1616 = vmatpush1.msra.mxu0 0.0
        %1617 = vmatprep.subr.mxu0 0.0
        %1618 = vmatpush1.msra.mxu0 %v1589
        %1619 = vmatprep.subr.mxu0 0.0
        %1620 = vmatpush1.msra.mxu0 %v1588
        %1621 = vmatprep.subr.mxu0 0.0
        %1622 = vmatpush1.msra.mxu0 %v1587
        %1623 = vmatprep.subr.mxu0 0.0
        %1624 = vmatpush1.msra.mxu0 %v1586
        %1625 = vmatprep.subr.mxu0 0.0
        %1626 = vmatpush2.msra.mxu0 0.0
        %1627 = vmatprep.subr.mxu0 0.0
        %1628 = vmatpush2.msra.mxu0 0.0
        %1629 = vmatprep.subr.mxu0 0.0
        %1630 = vmatpush2.msra.mxu0 0.0
        %1631 = vmatprep.subr.mxu0 0.0
        %1632 = vmatpush2.msra.mxu0 0.0
        %1633 = vmatprep.subr.mxu0 0.0
        %1634 = vmatpush2.msra.mxu0 0.0
        %1635 = vmatprep.subr.mxu0 0.0
        %1636 = vmatpush2.msra.mxu0 0.0
        %1637 = vmatprep.subr.mxu0 0.0
        %1638 = vmatpush2.msra.mxu0 0.0
        %1639 = vmatprep.subr.mxu0 0.0
        %1640 = vmatpush2.msra.mxu0 0.0
        %1641 = vmatprep.subr.mxu0 0.0
        %1642 = vmatpush2.msra.mxu0 0.0
        %1643 = vmatprep.subr.mxu0 0.0
        %1644 = vmatpush2.msra.mxu0 0.0
        %1645 = vmatprep.subr.mxu0 0.0
        %1646 = vmatpush2.msra.mxu0 0.0
        %1647 = vmatprep.subr.mxu0 0.0
        %1648 = vmatpush2.msra.mxu0 0.0
        %1649 = vmatprep.subr.mxu0 0.0
        %1650 = vmatpush2.msra.mxu0 0.0
        %1651 = vmatprep.subr.mxu0 0.0
        %1652 = vmatpush2.msra.mxu0 0.0
        %1653 = vmatprep.subr.mxu0 0.0
        %1654 = vmatpush2.msra.mxu0 0.0
        %1655 = vmatprep.subr.mxu0 0.0
        %1656 = vmatpush2.msra.mxu0 0.0
        %1657 = vmatprep.mubr.f32.mxu0 0.0
        %1658 = vmatmul.mubr.f32.gmra.mxu0 %v1591
        %v1659 = vpop.f32.mrf.mxu0
        %v1660 = vadd.f32 0.0, %v1659
        %v1661 = vpop.f32.mrf.mxu0
        %1662 = vdwg.mxu0
        %1664 = vrot.lane.b32.xlu0 %v1660, 112
        %v1665 = vpop.permute.xlu0 %1664
        %v1667 = vmax.f32 %v1660, %v1665
        %1669 = vrot.lane.b32.xlu0 %v1667, 96
        %v1670 = vpop.permute.xlu0 %1669
        %vm1672 = vcmask 917248
        %1673 = vst.msk [vmem:[%s313] sm:$0xff] %vm1672, %v1670
        %v1674 = vld [vmem:[#allocation6] sm:$0xff]
        %v1675 = vld [vmem:[#allocation6 + $0x8] sm:$0xff]
        %v1676 = vld [vmem:[#allocation6 + $0x10] sm:$0xff]
        %v1677 = vld [vmem:[#allocation6 + $0x18] sm:$0xff]
        %1678 = vrot.lane.b32.xlu0 %v1585, 64
        %v1679 = vpop.permute.xlu0 %1678
        %v1680 = vsel %vm1047, %v1679, 0
        %1682 = vmatprep.subr.mxu0 0.0
        %1683 = vmatpush1.msra.mxu0 0.0
        %1684 = vmatprep.subr.mxu0 0.0
        %1685 = vmatpush1.msra.mxu0 0.0
        %1686 = vmatprep.subr.mxu0 0.0
        %1687 = vmatpush1.msra.mxu0 0.0
        %1688 = vmatprep.subr.mxu0 0.0
        %1689 = vmatpush1.msra.mxu0 0.0
        %1690 = vmatprep.subr.mxu0 0.0
        %1691 = vmatpush1.msra.mxu0 0.0
        %1692 = vmatprep.subr.mxu0 0.0
        %1693 = vmatpush1.msra.mxu0 0.0
        %1694 = vmatprep.subr.mxu0 0.0
        %1695 = vmatpush1.msra.mxu0 0.0
        %1696 = vmatprep.subr.mxu0 0.0
        %1697 = vmatpush1.msra.mxu0 0.0
        %1698 = vmatprep.subr.mxu0 0.0
        %1699 = vmatpush1.msra.mxu0 0.0
        %1700 = vmatprep.subr.mxu0 0.0
        %1701 = vmatpush1.msra.mxu0 0.0
        %1702 = vmatprep.subr.mxu0 0.0
        %1703 = vmatpush1.msra.mxu0 0.0
        %1704 = vmatprep.subr.mxu0 0.0
        %1705 = vmatpush1.msra.mxu0 0.0
        %1706 = vmatprep.subr.mxu0 0.0
        %1707 = vmatpush1.msra.mxu0 %v1677
        %1708 = vmatprep.subr.mxu0 0.0
        %1709 = vmatpush1.msra.mxu0 %v1676
        %1710 = vmatprep.subr.mxu0 0.0
        %1711 = vmatpush1.msra.mxu0 %v1675
        %1712 = vmatprep.subr.mxu0 0.0
        %1713 = vmatpush1.msra.mxu0 %v1674
        %1714 = vmatprep.subr.mxu0 0.0
        %1715 = vmatpush2.msra.mxu0 0.0
        %1716 = vmatprep.subr.mxu0 0.0
        %1717 = vmatpush2.msra.mxu0 0.0
        %1718 = vmatprep.subr.mxu0 0.0
        %1719 = vmatpush2.msra.mxu0 0.0
        %1720 = vmatprep.subr.mxu0 0.0
        %1721 = vmatpush2.msra.mxu0 0.0
        %1722 = vmatprep.subr.mxu0 0.0
        %1723 = vmatpush2.msra.mxu0 0.0
        %1724 = vmatprep.subr.mxu0 0.0
        %1725 = vmatpush2.msra.mxu0 0.0
        %1726 = vmatprep.subr.mxu0 0.0
        %1727 = vmatpush2.msra.mxu0 0.0
        %1728 = vmatprep.subr.mxu0 0.0
        %1729 = vmatpush2.msra.mxu0 0.0
        %1730 = vmatprep.subr.mxu0 0.0
        %1731 = vmatpush2.msra.mxu0 0.0
        %1732 = vmatprep.subr.mxu0 0.0
        %1733 = vmatpush2.msra.mxu0 0.0
        %1734 = vmatprep.subr.mxu0 0.0
        %1735 = vmatpush2.msra.mxu0 0.0
        %1736 = vmatprep.subr.mxu0 0.0
        %1737 = vmatpush2.msra.mxu0 0.0
        %1738 = vmatprep.subr.mxu0 0.0
        %1739 = vmatpush2.msra.mxu0 0.0
        %1740 = vmatprep.subr.mxu0 0.0
        %1741 = vmatpush2.msra.mxu0 0.0
        %1742 = vmatprep.subr.mxu0 0.0
        %1743 = vmatpush2.msra.mxu0 0.0
        %1744 = vmatprep.subr.mxu0 0.0
        %1745 = vmatpush2.msra.mxu0 0.0
        %1746 = vmatprep.mubr.f32.mxu0 0.0
        %1747 = vmatmul.mubr.f32.gmra.mxu0 %v1680
        %v1748 = vpop.f32.mrf.mxu0
        %v1749 = vadd.f32 0.0, %v1748
        %v1750 = vpop.f32.mrf.mxu0
        %1751 = vdwg.mxu0
        %1753 = vrot.lane.b32.xlu0 %v1749, 112
        %v1754 = vpop.permute.xlu0 %1753
        %v1756 = vmax.f32 %v1749, %v1754
        %1758 = vrot.lane.b32.xlu0 %v1756, 112
        %v1759 = vpop.permute.xlu0 %1758
        %vm1761 = vcmask 1048448
        %1762 = vst.msk [vmem:[%s313] sm:$0xff] %vm1761, %v1759
        %s1763 = sand.u32 %s162, 1
        %s1764 = scalar_lea.sflag [#allocation5], %s1763
        %s1765 = sand.u32 %s162, 1
        %s1766 = smul.addr %s1765, 32
        %s1767 = scalar_lea.vmem [#allocation8], %s1766
        %s1768 = sand.u32 %s190, 1
        %s1769 = scalar_lea.sflag [#allocation10], %s1768
        %s1770 = sand.u32 %s190, 1
        %s1771 = smul.addr %s1770, 8
        %s1772 = scalar_lea.vmem [#allocation9], %s1771
        // Predicated region
        $region49: #{tpu_custom_call.1} parent=39 // pred_check
          %p1773 = pneg %p172
        $region50: #{tpu_custom_call.1} parent=39 // pred_check_branch
          %1775 = sbr.rel (%p1773) target = $region52
        $region51: #{tpu_custom_call.1} parent=39 // pred_region
          %s1776 = smul.u32 4, %s33
          %s1778 = ssub.s32 512, 512
          %1779 = vsyncadd %s1764, %s1778
          %s1780 = smul.addr %s32, 8
          %s1781 = sadd.s32 %s1776, %s1780
          %s1782 = smul.addr %s1781, 128
          %s1783 = scalar_lea.hbm %s5, %s1782
          %s1785 = sshll.u32 %s1767, 4
          %s1786 = int_to_ptr.vmem [resolvable:$true] %s1785
          %1788 = dma.vmem_to_hbm [thread:$0]  %s1786, 512, %s1783, %s1764
        $region52: #{tpu_custom_call.1} parent=39 // pred_fallthru
          _
        // Predicated region
        $region53: #{tpu_custom_call.1} parent=39 // pred_check
          %p1789 = pneg %p200
        $region54: #{tpu_custom_call.1} parent=39 // pred_check_branch
          %1791 = sbr.rel (%p1789) target = $region56
        $region55: #{tpu_custom_call.1} parent=39 // pred_region
          %s1793 = ssub.s32 128, 128
          %1794 = vsyncadd %s1769, %s1793
          %s1795 = smul.addr %s32, 2
          %s1796 = sadd.s32 %s33, %s1795
          %s1797 = smul.addr %s1796, 128
          %s1798 = scalar_lea.hbm %s6, %s1797
          %s1800 = sshll.u32 %s1772, 4
          %s1801 = int_to_ptr.vmem [resolvable:$true] %s1800
          %1803 = dma.vmem_to_hbm [thread:$0]  %s1801, 128, %s1798, %s1769
        $region56: #{tpu_custom_call.1} parent=39 // pred_fallthru
          _
      $region40: #{tpu_custom_call.1} parent=5 // pred_fallthru
        _
      %p1804 = scmp.le.s32.totalorder 2, %s23
      // Predicated region
      $region57: #{tpu_custom_call.1} parent=5 // pred_check
        %p1805 = pneg %p1804
      $region58: #{tpu_custom_call.1} parent=5 // pred_check_branch
        %1807 = sbr.rel (%p1805) target = $region60
      $region59: #{tpu_custom_call.1} parent=5 // pred_region
        %s1808 = ssub.s32 %s23, 2
        // Predicated region
        $region61: #{tpu_custom_call.1} parent=59 // pred_check
          %p1809 = pneg %p178
        $region62: #{tpu_custom_call.1} parent=59 // pred_check_branch
          %1811 = sbr.rel (%p1809) target = $region64
        $region63: #{tpu_custom_call.1} parent=59 // pred_region
          %s1812 = sand.u32 %s163, 1
          %s1813 = scalar_lea.sflag [#allocation5], %s1812
          %s1814 = sand.u32 %s163, 1
          %s1815 = smul.addr %s1814, 32
          %s1816 = scalar_lea.vmem [#allocation8], %s1815
          %1817 = dma.done %s1813, 512
        $region64: #{tpu_custom_call.1} parent=59 // pred_fallthru
          _
        // Predicated region
        $region65: #{tpu_custom_call.1} parent=59 // pred_check
          %p1818 = pneg %p206
        $region66: #{tpu_custom_call.1} parent=59 // pred_check_branch
          %1820 = sbr.rel (%p1818) target = $region68
        $region67: #{tpu_custom_call.1} parent=59 // pred_region
          %s1821 = sand.u32 %s191, 1
          %s1822 = scalar_lea.sflag [#allocation10], %s1821
          %s1823 = sand.u32 %s191, 1
          %s1824 = smul.addr %s1823, 8
          %s1825 = scalar_lea.vmem [#allocation9], %s1824
          %1826 = dma.done %s1822, 128
        $region68: #{tpu_custom_call.1} parent=59 // pred_fallthru
          _
      $region60: #{tpu_custom_call.1} parent=5 // pred_fallthru
        _
    $region6: #{tpu_custom_call.1} parent=1 // loop_footer
      %s27 = sadd.s32 1, %s23
    $region7: #{tpu_custom_call.1} parent=1 // loop_footer_branch
      %22 = sbr.rel target = $region3
    $region8: #{tpu_custom_call.1} parent=1 // loop_exit
      _
    %1827 = vsyncpa [#allocation4], 1
    %s1828 = scalar_lea.sflag [#allocation4], 1
    %1829 = vsyncpa %s1828, 1
    %1830 = vsyncpa [#allocation7], 1
    %1831 = vsyncpa [#allocation5], 1
    %s1832 = scalar_lea.sflag [#allocation5], 1
    %1833 = vsyncpa %s1832, 1
    %1834 = vsyncpa [#allocation10], 1
    %s1835 = scalar_lea.sflag [#allocation10], 1
    %1836 = vsyncpa %s1835, 1

</llo_original>
